<compile_context>
chip_gen: v6e
topology: v6e:2x2x1
jax: 0.10.0
libtpu: 0.0.40
codegen_flags: <defaults>
</compile_context>

<pallas_src>
import functools

import jax
import jax.numpy as jnp
from jax import lax
from jax.experimental import pallas as pl
from jax.experimental.pallas import tpu as pltpu

EPS = 1e-5


def resblock_kernel(
    xT_ref,                      # (Cin,  Ppix)  input, channels x padded-pixels
    m_ref,                       # (1,    Ppix)  1.0 at real image pixels
    w1T_ref, g1_ref, be1_ref,    # conv1 (Cout, 9*Cin),  bn1 (Cout, 1)
    w2T_ref, g2_ref, be2_ref,    # conv2 (Cout, 9*Cout), bn2 (Cout, 1)
    wsT_ref, gs_ref, bes_ref,    # shortcut 1x1 (Cout, Cin), bn (Cout, 1)
    out_ref,                     # (Cout, Ppix)
    *, B, H, W, Wp,
):
    Cin, Pp = xT_ref.shape
    inv_n = 1.0 / float(B * H * W)   # BN stats count only real pixels

    x = xT_ref[...]
    mask = m_ref[...]

    def im2col(a):
        # a: (C, Pp), pixel index on lanes.  Row block t = a shifted by the
        # t-th 3x3 tap offset, so the conv is a single MXU matmul.  Rolls are
        # XLU lane rotations (cheap, off the VALU/vst path); wrap-around only
        # pollutes border/tail pixels, which are masked out of the BN stats
        # and never read back as conv inputs (they are re-zeroed via `mask`).
        rows = []
        for dy in (-1, 0, 1):
            for dx in (-1, 0, 1):
                off = dy * Wp + dx
                if off == 0:
                    rows.append(a)
                else:
                    rows.append(pltpu.roll(a, shift=(-off) % Pp, axis=1))
        return jnp.concatenate(rows, axis=0)          # (9*C, Pp)

    def bn(y, gamma, beta):
        # One-pass training-mode batch norm (biased variance), folded into a
        # per-channel scale/shift; rsqrt stays on the EUP.
        ym = y * mask
        s1 = jnp.sum(ym, axis=1, keepdims=True)
        s2 = jnp.sum(ym * ym, axis=1, keepdims=True)
        mean = s1 * inv_n
        var = s2 * inv_n - mean * mean
        scale = gamma * lax.rsqrt(var + EPS)
        shift = beta - mean * scale
        return y * scale + shift

    # ---- conv1 (3x3, pad 1) + bn1 + relu ----
    # TODO(synk): bf16 MXU inputs would double matmul throughput; kept f32 so
    # the tight 2e-3 check against the f32 reference holds at these shapes.
    h1 = jnp.dot(w1T_ref[...], im2col(x), preferred_element_type=jnp.float32)
    y = jnp.maximum(bn(h1, g1_ref[...], be1_ref[...]), 0.0) * mask

    # ---- conv2 (3x3, pad 1) + bn2 ----
    h2 = jnp.dot(w2T_ref[...], im2col(y), preferred_element_type=jnp.float32)
    o2 = bn(h2, g2_ref[...], be2_ref[...])

    # ---- shortcut: 1x1 conv + bn on the original input ----
    s = jnp.dot(wsT_ref[...], x, preferred_element_type=jnp.float32)
    so = bn(s, gs_ref[...], bes_ref[...])

    out_ref[...] = (so + o2).astype(out_ref.dtype)


def resblock_forward(x_nchw, params):
    """x_nchw: (B, Cin, H, W) float32. Returns (B, Cout, H, W)."""
    # TODO(synk): stride > 1 and the identity-shortcut (ch_in == ch_out) variant
    # are not implemented; the example ResBlock uses stride=1, ch_in != ch_out.
    (w1, b1, g1, be1, w2, b2, g2, be2, ws, bs, gs, bes) = params
    del b1, b2, bs  # conv biases are cancelled by training-mode BN mean subtraction
    B, Cin, H, W = x_nchw.shape
    Cout = w1.shape[-1]
    Hp, Wp = H + 2, W + 2
    P = B * Hp * Wp
    Pp = ((P + 127) // 128) * 128            # lane-align the pixel axis

    # Channels-on-sublanes / padded-pixels-on-lanes layout.
    xpad = jnp.pad(x_nchw, ((0, 0), (0, 0), (1, 1), (1, 1)))     # (B,Cin,Hp,Wp)
    xT = jnp.transpose(xpad, (1, 0, 2, 3)).reshape(Cin, P)
    xT = jnp.pad(xT, ((0, 0), (0, Pp - P)))

    # Mask of real (non-padding) pixels, shared by all batch elements.
    hp = jnp.arange(Hp)
    wp = jnp.arange(Wp)
    m2d = ((hp[:, None] >= 1) & (hp[:, None] <= H)
           & (wp[None, :] >= 1) & (wp[None, :] <= W)).astype(jnp.float32)
    mask = jnp.tile(m2d.reshape(-1), (B,))
    mask = jnp.pad(mask, (0, Pp - P)).reshape(1, Pp)

    # Flatten conv weights for the one-matmul-per-conv form:
    # column index = (ky*3 + kx)*C + c  — matches the in-kernel tap ordering.
    w1T = jnp.transpose(w1, (3, 0, 1, 2)).reshape(Cout, 9 * Cin)
    w2T = jnp.transpose(w2, (3, 0, 1, 2)).reshape(Cout, 9 * Cout)
    wsT = jnp.transpose(ws, (1, 0))

    cvec = lambda v: v.reshape(Cout, 1)
    vmem = pl.BlockSpec(memory_space=pltpu.MemorySpace.VMEM)
    kern = functools.partial(resblock_kernel, B=B, H=H, W=W, Wp=Wp)

    # The full resident set here is < 1 MiB, so a single un-gridded invocation
    # is used; 32 MiB scoped VMEM fits every generation (v7x: 64 MiB physical).
    # TODO(synk): for large B*H*W, add a row-tiled grid with double-buffered
    # BlockSpecs and a two-phase (sum/sumsq then normalize) BN scheme.
    outT = pl.pallas_call(
        kern,
        out_shape=jax.ShapeDtypeStruct((Cout, Pp), jnp.float32),
        in_specs=[vmem] * 11,
        out_specs=vmem,
        compiler_params=pltpu.CompilerParams(vmem_limit_bytes=32 * 1024 * 1024),
    )(xT, mask, w1T, cvec(g1), cvec(be1), w2T, cvec(g2), cvec(be2),
      wsT, cvec(gs), cvec(bes))

    out = outT[:, :P].reshape(Cout, B, Hp, Wp)[:, :, 1:H + 1, 1:W + 1]
    return jnp.transpose(out, (1, 0, 2, 3))             # -> NCHW


def reference_forward(x_nchw, params):
    """Pure-JAX reference (lax.conv, with conv biases) for verification."""
    (w1, b1, g1, be1, w2, b2, g2, be2, ws, bs, gs, bes) = params
    x = jnp.transpose(x_nchw, (0, 2, 3, 1))  # NHWC
    dn = ("NHWC", "HWIO", "NHWC")

    def bn(y, gamma, beta):
        mean = jnp.mean(y, axis=(0, 1, 2), keepdims=True)
        var = jnp.mean((y - mean) ** 2, axis=(0, 1, 2), keepdims=True)
        return (y - mean) * lax.rsqrt(var + EPS) * gamma.reshape(1, 1, 1, -1) \
            + beta.reshape(1, 1, 1, -1)

    y = lax.conv_general_dilated(x, w1, (1, 1), "SAME", dimension_numbers=dn)
    y = y + b1.reshape(1, 1, 1, -1)
    y = jnp.maximum(bn(y, g1, be1), 0.0)

    z = lax.conv_general_dilated(y, w2, (1, 1), "SAME", dimension_numbers=dn)
    z = z + b2.reshape(1, 1, 1, -1)
    z = bn(z, g2, be2)

    s = lax.conv_general_dilated(x, ws.reshape(1, 1, *ws.shape), (1, 1), "VALID",
                                 dimension_numbers=dn)
    s = s + bs.reshape(1, 1, 1, -1)
    s = bn(s, gs, bes)

    return jnp.transpose(s + z, (0, 3, 1, 2))


def make_params(key, ch_in, ch_out):
    ks = jax.random.split(key, 8)
    w1 = 0.1 * jax.random.normal(ks[0], (3, 3, ch_in, ch_out), jnp.float32)
    b1 = 0.1 * jax.random.normal(ks[1], (1, ch_out), jnp.float32)
    g1 = 1.0 + 0.1 * jax.random.normal(ks[2], (1, ch_out), jnp.float32)
    be1 = 0.1 * jax.random.normal(ks[3], (1, ch_out), jnp.float32)
    w2 = 0.1 * jax.random.normal(ks[4], (3, 3, ch_out, ch_out), jnp.float32)
    b2 = 0.1 * jax.random.normal(ks[5], (1, ch_out), jnp.float32)
    g2 = 1.0 + 0.1 * jax.random.normal(ks[6], (1, ch_out), jnp.float32)
    be2 = 0.1 * jax.random.normal(ks[7], (1, ch_out), jnp.float32)
    ks2 = jax.random.split(ks[7], 4)
    ws = 0.1 * jax.random.normal(ks2[0], (ch_in, ch_out), jnp.float32)
    bs = 0.1 * jax.random.normal(ks2[1], (1, ch_out), jnp.float32)
    gs = 1.0 + 0.1 * jax.random.normal(ks2[2], (1, ch_out), jnp.float32)
    bes = 0.1 * jax.random.normal(ks2[3], (1, ch_out), jnp.float32)
    return (w1, b1, g1, be1, w2, b2, g2, be2, ws, bs, gs, bes)


if __name__ == "__main__":
    key = jax.random.PRNGKey(0)
    kx, kp = jax.random.split(key)

    B, CH_IN, CH_OUT, H, W = 2, 4, 8, 16, 16   # ResBlock(ch_in=4, ch_out=8, stride=1)
    x = jax.random.normal(kx, (B, CH_IN, H, W), jnp.float32)
    params = make_params(kp, CH_IN, CH_OUT)

    out = jax.block_until_ready(jax.jit(resblock_forward)(x, params))
    ref = jax.block_until_ready(jax.jit(reference_forward)(x, params))

    assert out.shape == (B, CH_OUT, H, W)
    assert jnp.allclose(out, ref, rtol=2e-3, atol=2e-3), \
        f"max abs err {jnp.max(jnp.abs(out - ref))}"
    print("KERNEL_OK")
</pallas_src>

<mosaic_0001>
module attributes {stable_mosaic.version = 11 : i64} {
  func.func @resblock_kernel(%arg0: memref<4x768xf32, #tpu.memory_space<vmem>>, %arg1: memref<1x768xf32, #tpu.memory_space<vmem>>, %arg2: memref<8x36xf32, #tpu.memory_space<vmem>>, %arg3: memref<8x1xf32, #tpu.memory_space<vmem>>, %arg4: memref<8x1xf32, #tpu.memory_space<vmem>>, %arg5: memref<8x72xf32, #tpu.memory_space<vmem>>, %arg6: memref<8x1xf32, #tpu.memory_space<vmem>>, %arg7: memref<8x1xf32, #tpu.memory_space<vmem>>, %arg8: memref<8x4xf32, #tpu.memory_space<vmem>>, %arg9: memref<8x1xf32, #tpu.memory_space<vmem>>, %arg10: memref<8x1xf32, #tpu.memory_space<vmem>>, %arg11: memref<8x768xf32, #tpu.memory_space<vmem>>) attributes {dimension_semantics = [], scalar_prefetch = 0 : i64, scratch_operands = 0 : i64, tpu.core_type = #tpu.core_type<tc>} {
    %c0 = arith.constant 0 : index
    %c0_0 = arith.constant 0 : index
    %0 = vector.load %arg0[%c0, %c0_0] : memref<4x768xf32, #tpu.memory_space<vmem>>, vector<4x768xf32>
    %c0_1 = arith.constant 0 : index
    %c0_2 = arith.constant 0 : index
    %1 = vector.load %arg1[%c0_1, %c0_2] : memref<1x768xf32, #tpu.memory_space<vmem>>, vector<1x768xf32>
    %c0_3 = arith.constant 0 : index
    %c0_4 = arith.constant 0 : index
    %2 = vector.load %arg2[%c0_3, %c0_4] : memref<8x36xf32, #tpu.memory_space<vmem>>, vector<8x36xf32>
    %c19_i32 = arith.constant 19 : i32
    %3 = tpu.dynamic_rotate %0 by %c19_i32 dim 1 : vector<4x768xf32>, i32 -> vector<4x768xf32>
    %c18_i32 = arith.constant 18 : i32
    %4 = tpu.dynamic_rotate %0 by %c18_i32 dim 1 : vector<4x768xf32>, i32 -> vector<4x768xf32>
    %c17_i32 = arith.constant 17 : i32
    %5 = tpu.dynamic_rotate %0 by %c17_i32 dim 1 : vector<4x768xf32>, i32 -> vector<4x768xf32>
    %c1_i32 = arith.constant 1 : i32
    %6 = tpu.dynamic_rotate %0 by %c1_i32 dim 1 : vector<4x768xf32>, i32 -> vector<4x768xf32>
    %c767_i32 = arith.constant 767 : i32
    %7 = tpu.dynamic_rotate %0 by %c767_i32 dim 1 : vector<4x768xf32>, i32 -> vector<4x768xf32>
    %c751_i32 = arith.constant 751 : i32
    %8 = tpu.dynamic_rotate %0 by %c751_i32 dim 1 : vector<4x768xf32>, i32 -> vector<4x768xf32>
    %c750_i32 = arith.constant 750 : i32
    %9 = tpu.dynamic_rotate %0 by %c750_i32 dim 1 : vector<4x768xf32>, i32 -> vector<4x768xf32>
    %c749_i32 = arith.constant 749 : i32
    %10 = tpu.dynamic_rotate %0 by %c749_i32 dim 1 : vector<4x768xf32>, i32 -> vector<4x768xf32>
    %11 = tpu.concatenate %3, %4, %5, %6, %0, %7, %8, %9, %10 in 0 : vector<4x768xf32>, vector<4x768xf32>, vector<4x768xf32>, vector<4x768xf32>, vector<4x768xf32>, vector<4x768xf32>, vector<4x768xf32>, vector<4x768xf32>, vector<4x768xf32> -> vector<36x768xf32>
    %cst = arith.constant dense<0.000000e+00> : vector<8x768xf32>
    %12 = tpu.matmul %2, %11, %cst {dimension_numbers = #tpu.dot_dimension_numbers<[1], [0], [0], [1], [0, 0, 1, 1], [], []>} : vector<8x36xf32>, vector<36x768xf32>, vector<8x768xf32> -> vector<8x768xf32>
    %c0_5 = arith.constant 0 : index
    %c0_6 = arith.constant 0 : index
    %13 = vector.load %arg3[%c0_5, %c0_6] : memref<8x1xf32, #tpu.memory_space<vmem>>, vector<8x1xf32>
    %c0_7 = arith.constant 0 : index
    %c0_8 = arith.constant 0 : index
    %14 = vector.load %arg4[%c0_7, %c0_8] : memref<8x1xf32, #tpu.memory_space<vmem>>, vector<8x1xf32>
    %15 = vector.broadcast %1 : vector<1x768xf32> to vector<8x768xf32>
    %16 = arith.mulf %12, %15 : vector<8x768xf32>
    %cst_9 = arith.constant dense<0.000000e+00> : vector<8xf32>
    %17 = vector.multi_reduction <add>, %16, %cst_9 [1] : vector<8x768xf32> to vector<8xf32>
    %18 = vector.shape_cast %17 : vector<8xf32> to vector<8x1xf32>
    %19 = arith.mulf %16, %16 : vector<8x768xf32>
    %cst_10 = arith.constant dense<0.000000e+00> : vector<8xf32>
    %20 = vector.multi_reduction <add>, %19, %cst_10 [1] : vector<8x768xf32> to vector<8xf32>
    %21 = vector.shape_cast %20 : vector<8xf32> to vector<8x1xf32>
    %cst_11 = arith.constant 0.001953125 : f32
    %22 = vector.broadcast %cst_11 : f32 to vector<8x1xf32>
    %23 = arith.mulf %18, %22 : vector<8x1xf32>
    %cst_12 = arith.constant 0.001953125 : f32
    %24 = vector.broadcast %cst_12 : f32 to vector<8x1xf32>
    %25 = arith.mulf %21, %24 : vector<8x1xf32>
    %26 = arith.mulf %23, %23 : vector<8x1xf32>
    %27 = arith.subf %25, %26 : vector<8x1xf32>
    %cst_13 = arith.constant 9.99999974E-6 : f32
    %28 = vector.broadcast %cst_13 : f32 to vector<8x1xf32>
    %29 = arith.addf %27, %28 : vector<8x1xf32>
    %30 = math.rsqrt %29 : vector<8x1xf32>
    %31 = arith.mulf %13, %30 : vector<8x1xf32>
    %32 = arith.mulf %23, %31 : vector<8x1xf32>
    %33 = arith.subf %14, %32 : vector<8x1xf32>
    %34 = vector.broadcast %31 : vector<8x1xf32> to vector<8x768xf32>
    %35 = arith.mulf %12, %34 : vector<8x768xf32>
    %36 = vector.broadcast %33 : vector<8x1xf32> to vector<8x768xf32>
    %37 = arith.addf %35, %36 : vector<8x768xf32>
    %cst_14 = arith.constant 0.000000e+00 : f32
    %38 = vector.broadcast %cst_14 : f32 to vector<8x768xf32>
    %39 = arith.maximumf %37, %38 : vector<8x768xf32>
    %40 = vector.broadcast %1 : vector<1x768xf32> to vector<8x768xf32>
    %41 = arith.mulf %39, %40 : vector<8x768xf32>
    %c0_15 = arith.constant 0 : index
    %c0_16 = arith.constant 0 : index
    %42 = vector.load %arg5[%c0_15, %c0_16] : memref<8x72xf32, #tpu.memory_space<vmem>>, vector<8x72xf32>
    %c19_i32_17 = arith.constant 19 : i32
    %43 = tpu.dynamic_rotate %41 by %c19_i32_17 dim 1 : vector<8x768xf32>, i32 -> vector<8x768xf32>
    %c18_i32_18 = arith.constant 18 : i32
    %44 = tpu.dynamic_rotate %41 by %c18_i32_18 dim 1 : vector<8x768xf32>, i32 -> vector<8x768xf32>
    %c17_i32_19 = arith.constant 17 : i32
    %45 = tpu.dynamic_rotate %41 by %c17_i32_19 dim 1 : vector<8x768xf32>, i32 -> vector<8x768xf32>
    %c1_i32_20 = arith.constant 1 : i32
    %46 = tpu.dynamic_rotate %41 by %c1_i32_20 dim 1 : vector<8x768xf32>, i32 -> vector<8x768xf32>
    %c767_i32_21 = arith.constant 767 : i32
    %47 = tpu.dynamic_rotate %41 by %c767_i32_21 dim 1 : vector<8x768xf32>, i32 -> vector<8x768xf32>
    %c751_i32_22 = arith.constant 751 : i32
    %48 = tpu.dynamic_rotate %41 by %c751_i32_22 dim 1 : vector<8x768xf32>, i32 -> vector<8x768xf32>
    %c750_i32_23 = arith.constant 750 : i32
    %49 = tpu.dynamic_rotate %41 by %c750_i32_23 dim 1 : vector<8x768xf32>, i32 -> vector<8x768xf32>
    %c749_i32_24 = arith.constant 749 : i32
    %50 = tpu.dynamic_rotate %41 by %c749_i32_24 dim 1 : vector<8x768xf32>, i32 -> vector<8x768xf32>
    %51 = tpu.concatenate %43, %44, %45, %46, %41, %47, %48, %49, %50 in 0 : vector<8x768xf32>, vector<8x768xf32>, vector<8x768xf32>, vector<8x768xf32>, vector<8x768xf32>, vector<8x768xf32>, vector<8x768xf32>, vector<8x768xf32>, vector<8x768xf32> -> vector<72x768xf32>
    %cst_25 = arith.constant dense<0.000000e+00> : vector<8x768xf32>
    %52 = tpu.matmul %42, %51, %cst_25 {dimension_numbers = #tpu.dot_dimension_numbers<[1], [0], [0], [1], [0, 0, 1, 1], [], []>} : vector<8x72xf32>, vector<72x768xf32>, vector<8x768xf32> -> vector<8x768xf32>
    %c0_26 = arith.constant 0 : index
    %c0_27 = arith.constant 0 : index
    %53 = vector.load %arg6[%c0_26, %c0_27] : memref<8x1xf32, #tpu.memory_space<vmem>>, vector<8x1xf32>
    %c0_28 = arith.constant 0 : index
    %c0_29 = arith.constant 0 : index
    %54 = vector.load %arg7[%c0_28, %c0_29] : memref<8x1xf32, #tpu.memory_space<vmem>>, vector<8x1xf32>
    %55 = vector.broadcast %1 : vector<1x768xf32> to vector<8x768xf32>
    %56 = arith.mulf %52, %55 : vector<8x768xf32>
    %cst_30 = arith.constant dense<0.000000e+00> : vector<8xf32>
    %57 = vector.multi_reduction <add>, %56, %cst_30 [1] : vector<8x768xf32> to vector<8xf32>
    %58 = vector.shape_cast %57 : vector<8xf32> to vector<8x1xf32>
    %59 = arith.mulf %56, %56 : vector<8x768xf32>
    %cst_31 = arith.constant dense<0.000000e+00> : vector<8xf32>
    %60 = vector.multi_reduction <add>, %59, %cst_31 [1] : vector<8x768xf32> to vector<8xf32>
    %61 = vector.shape_cast %60 : vector<8xf32> to vector<8x1xf32>
    %cst_32 = arith.constant 0.001953125 : f32
    %62 = vector.broadcast %cst_32 : f32 to vector<8x1xf32>
    %63 = arith.mulf %58, %62 : vector<8x1xf32>
    %cst_33 = arith.constant 0.001953125 : f32
    %64 = vector.broadcast %cst_33 : f32 to vector<8x1xf32>
    %65 = arith.mulf %61, %64 : vector<8x1xf32>
    %66 = arith.mulf %63, %63 : vector<8x1xf32>
    %67 = arith.subf %65, %66 : vector<8x1xf32>
    %cst_34 = arith.constant 9.99999974E-6 : f32
    %68 = vector.broadcast %cst_34 : f32 to vector<8x1xf32>
    %69 = arith.addf %67, %68 : vector<8x1xf32>
    %70 = math.rsqrt %69 : vector<8x1xf32>
    %71 = arith.mulf %53, %70 : vector<8x1xf32>
    %72 = arith.mulf %63, %71 : vector<8x1xf32>
    %73 = arith.subf %54, %72 : vector<8x1xf32>
    %74 = vector.broadcast %71 : vector<8x1xf32> to vector<8x768xf32>
    %75 = arith.mulf %52, %74 : vector<8x768xf32>
    %76 = vector.broadcast %73 : vector<8x1xf32> to vector<8x768xf32>
    %77 = arith.addf %75, %76 : vector<8x768xf32>
    %c0_35 = arith.constant 0 : index
    %c0_36 = arith.constant 0 : index
    %78 = vector.load %arg8[%c0_35, %c0_36] : memref<8x4xf32, #tpu.memory_space<vmem>>, vector<8x4xf32>
    %cst_37 = arith.constant dense<0.000000e+00> : vector<8x768xf32>
    %79 = tpu.matmul %78, %0, %cst_37 {dimension_numbers = #tpu.dot_dimension_numbers<[1], [0], [0], [1], [0, 0, 1, 1], [], []>} : vector<8x4xf32>, vector<4x768xf32>, vector<8x768xf32> -> vector<8x768xf32>
    %c0_38 = arith.constant 0 : index
    %c0_39 = arith.constant 0 : index
    %80 = vector.load %arg9[%c0_38, %c0_39] : memref<8x1xf32, #tpu.memory_space<vmem>>, vector<8x1xf32>
    %c0_40 = arith.constant 0 : index
    %c0_41 = arith.constant 0 : index
    %81 = vector.load %arg10[%c0_40, %c0_41] : memref<8x1xf32, #tpu.memory_space<vmem>>, vector<8x1xf32>
    %82 = vector.broadcast %1 : vector<1x768xf32> to vector<8x768xf32>
    %83 = arith.mulf %79, %82 : vector<8x768xf32>
    %cst_42 = arith.constant dense<0.000000e+00> : vector<8xf32>
    %84 = vector.multi_reduction <add>, %83, %cst_42 [1] : vector<8x768xf32> to vector<8xf32>
    %85 = vector.shape_cast %84 : vector<8xf32> to vector<8x1xf32>
    %86 = arith.mulf %83, %83 : vector<8x768xf32>
    %cst_43 = arith.constant dense<0.000000e+00> : vector<8xf32>
    %87 = vector.multi_reduction <add>, %86, %cst_43 [1] : vector<8x768xf32> to vector<8xf32>
    %88 = vector.shape_cast %87 : vector<8xf32> to vector<8x1xf32>
    %cst_44 = arith.constant 0.001953125 : f32
    %89 = vector.broadcast %cst_44 : f32 to vector<8x1xf32>
    %90 = arith.mulf %85, %89 : vector<8x1xf32>
    %cst_45 = arith.constant 0.001953125 : f32
    %91 = vector.broadcast %cst_45 : f32 to vector<8x1xf32>
    %92 = arith.mulf %88, %91 : vector<8x1xf32>
    %93 = arith.mulf %90, %90 : vector<8x1xf32>
    %94 = arith.subf %92, %93 : vector<8x1xf32>
    %cst_46 = arith.constant 9.99999974E-6 : f32
    %95 = vector.broadcast %cst_46 : f32 to vector<8x1xf32>
    %96 = arith.addf %94, %95 : vector<8x1xf32>
    %97 = math.rsqrt %96 : vector<8x1xf32>
    %98 = arith.mulf %80, %97 : vector<8x1xf32>
    %99 = arith.mulf %90, %98 : vector<8x1xf32>
    %100 = arith.subf %81, %99 : vector<8x1xf32>
    %101 = vector.broadcast %98 : vector<8x1xf32> to vector<8x768xf32>
    %102 = arith.mulf %79, %101 : vector<8x768xf32>
    %103 = vector.broadcast %100 : vector<8x1xf32> to vector<8x768xf32>
    %104 = arith.addf %102, %103 : vector<8x768xf32>
    %105 = arith.addf %104, %77 : vector<8x768xf32>
    %c0_47 = arith.constant 0 : index
    %c0_48 = arith.constant 0 : index
    %106 = vector.load %arg11[%c0_47, %c0_48] : memref<8x768xf32, #tpu.memory_space<vmem>>, vector<8x768xf32>
    tpu.vector_store %arg11[%c0_47, %c0_48], %105 {strides = array<i32>} : memref<8x768xf32, #tpu.memory_space<vmem>>, vector<8x768xf32>,
    return
  }
}

</mosaic_0001>

<llo_original>
// kernel: tile.6
$region0: #{tile.6}
  #allocation0 [shape = 's32[1]{0}', space=sflag, size = 0x4, scoped, tag = 'scoped memory for tile.6']
  %s0 = inlined_call_operand.vmem [shape: f32[324], index: 0, kind: input, shape index: {}]
  %s1 = inlined_call_operand.vmem [shape: f32[2,324], index: 1, kind: output, shape index: {}]
  // Predicated region
  $region2: #{tile.6} parent=0 // pred_check
    _
  $region3: #{tile.6} parent=0 // pred_check_branch
    %3 = sbr.rel (0) target = $region5
  $region4: #{tile.6} parent=0 // pred_region
    _
  $region5: #{tile.6} parent=0 // pred_fallthru
    _
  %v4 = vld [vmem:[%s0] ss:$0 sm:$0xff]
  %5 = vst [vmem:[%s1] sm:$0x3] %v4
  %s6 = scalar_lea.vmem %s0, 1
  %v7 = vld [vmem:[%s6] ss:$0 sm:$0xff]
  %s8 = scalar_lea.vmem %s1, 2
  %9 = vst [vmem:[%s8] sm:$0x3] %v7
  %s10 = scalar_lea.vmem %s0, 2
  %v11 = vld [vmem:[%s10] ss:$0 sm:$0xff]
  %s12 = scalar_lea.vmem %s1, 4
  %13 = vst [vmem:[%s12] sm:$0x3] %v11

// kernel: tile.7
$region0: #{tile.7}
  %s0 = inlined_call_operand.vmem [shape: f32[2,324], index: 0, kind: input, shape index: {}]
  %s1 = inlined_call_operand.vmem [shape: f32[648], index: 1, kind: output, shape index: {}]
  $region1: #{tile.7} parent=0
    #allocation0 [shape = 'u8[12288]{0}', space=vmem, size = 0x3000, scoped, tag = 'scoped mem for input reshape']
    %s3 = sshll.u32 1, 2
    %s4 = ssub.s32 %s3, 1
    %s5 = smul.addr 2, 2
    %s6 = scalar_lea.vmem %s0, %s5
    %v7 = vld [vmem:[%s6] sm:%s4]
    %s8 = scalar_lea.vmem [#allocation0], 16
    %9 = vst [vmem:[%s8] sm:%s4] %v7
    %s10 = scalar_lea.vmem %s0, 2
    %v11 = vld [vmem:[%s10] sm:%s4]
    %s12 = scalar_lea.vmem [#allocation0], 8
    %13 = vst [vmem:[%s12] sm:%s4] %v11
    %v14 = vld [vmem:[%s0] sm:%s4]
    %15 = vst [vmem:[#allocation0] sm:%s4] %v14
    %s16 = scalar_lea.vmem [#allocation0], 16
    %v17 = vld [vmem:[%s16] sm:$0x1]
    %vm18 = vcmask 556032
    %s19 = scalar_lea.vmem %s1, 2
    %20 = vst.msk [vmem:[%s19] sm:$0x1] %vm18, %v17
    %s21 = smov 3
    %v22 = vld [vmem:[#allocation0] ss:$8 sm:%s21]
    %23 = vst [vmem:[%s1] sm:$0x3] %v22
    %s24 = scalar_lea.vmem [#allocation0], 17
    %v25 = vld [vmem:[%s24] sm:$0x1]
    %s26 = scalar_lea.vmem [#allocation0], 1
    %v27 = vld [vmem:[%s26] ss:$8 sm:$0x7]
    %vm28 = vcmask 490496
    %v29 = vsel %vm28, %v27, %v25
    %30 = vrot.lane.b32.xlu0 %v29, 68
    %v31 = vpop.permute.xlu0 %30
    %vm32 = vcmask 64512
    %s33 = scalar_lea.vmem %s1, 5
    %34 = vst.msk [vmem:[%s33] sm:$0x1] %vm32, %v31
    %vm35 = vcmask 1048096
    %s36 = scalar_lea.vmem %s1, 2
    %37 = vst.msk [vmem:[%s36] sm:$0x7] %vm35, %v31
    %s38 = scalar_lea.vmem [#allocation0], 1
    %s39 = smov 3
    %v40 = vld [vmem:[%s38] ss:$8 sm:%s39]
    %41 = vrot.lane.b32.xlu0 %v40, 68
    %v42 = vpop.permute.xlu0 %41
    %vm43 = vcmask 556032
    %s44 = scalar_lea.vmem %s1, 3
    %45 = vst.msk [vmem:[%s44] sm:$0x3] %vm43, %v42

// kernel: resblock_forward.1
$region0: #{resblock_forward.1}
  #allocation0 [shape = 'u32[]', space=smem, size = 0x4, offset = 0x4, fixed_abs, tag = 'smem constant byte address 0x4 - core index']
  #allocation1 [shape = 'u32[144,128]{1,0:T(1,128)}', space=vmem, size = 0x12000, scoped, tag = 'internal scratch']
  %s0 = inlined_call_operand.vmem [shape: f32[4,768], index: 0, kind: input, shape index: {}]
  %s1 = inlined_call_operand.vmem [shape: f32[1,768], index: 1, kind: input, shape index: {}]
  %s2 = inlined_call_operand.vmem [shape: f32[8,36], index: 2, kind: input, shape index: {}]
  %s3 = inlined_call_operand.vmem [shape: f32[8,1], index: 3, kind: input, shape index: {}]
  %s4 = inlined_call_operand.vmem [shape: f32[8,1], index: 4, kind: input, shape index: {}]
  %s5 = inlined_call_operand.vmem [shape: f32[8,72], index: 5, kind: input, shape index: {}]
  %s6 = inlined_call_operand.vmem [shape: f32[8,1], index: 6, kind: input, shape index: {}]
  %s7 = inlined_call_operand.vmem [shape: f32[8,1], index: 7, kind: input, shape index: {}]
  %s8 = inlined_call_operand.vmem [shape: f32[8,4], index: 8, kind: input, shape index: {}]
  %s9 = inlined_call_operand.vmem [shape: f32[8,1], index: 9, kind: input, shape index: {}]
  %s10 = inlined_call_operand.vmem [shape: f32[8,1], index: 10, kind: input, shape index: {}]
  %s11 = inlined_call_operand.vmem [shape: f32[8,768], index: 11, kind: output, shape index: {}]
  %s12 = sld [smem:[#allocation0]]
  $region54: #{resblock_forward.1} parent=0
    _
  %s14 = ssub.s32 1, %s12
  %s15 = scalar_select 0, %s14, %s12
  // Predicated region
  $region2: #{resblock_forward.1} parent=0 // pred_check
    _
  $region3: #{resblock_forward.1} parent=0 // pred_check_branch
    %17 = sbr.rel (0) target = $region5
  $region4: #{resblock_forward.1} parent=0 // pred_region
    _
  $region5: #{resblock_forward.1} parent=0 // pred_fallthru
    _
  // Predicated region
  $region6: #{resblock_forward.1} parent=0 // pred_check
    _
  $region7: #{resblock_forward.1} parent=0 // pred_check_branch
    %19 = sbr.rel (0) target = $region9
  $region8: #{resblock_forward.1} parent=0 // pred_region
    _
  $region9: #{resblock_forward.1} parent=0 // pred_fallthru
    _
  // Predicated region
  $region10: #{resblock_forward.1} parent=0 // pred_check
    _
  $region11: #{resblock_forward.1} parent=0 // pred_check_branch
    %21 = sbr.rel (0) target = $region13
  $region12: #{resblock_forward.1} parent=0 // pred_region
    _
  $region13: #{resblock_forward.1} parent=0 // pred_fallthru
    _
  // Predicated region
  $region14: #{resblock_forward.1} parent=0 // pred_check
    _
  $region15: #{resblock_forward.1} parent=0 // pred_check_branch
    %23 = sbr.rel (0) target = $region17
  $region16: #{resblock_forward.1} parent=0 // pred_region
    _
  $region17: #{resblock_forward.1} parent=0 // pred_fallthru
    _
  // Predicated region
  $region18: #{resblock_forward.1} parent=0 // pred_check
    _
  $region19: #{resblock_forward.1} parent=0 // pred_check_branch
    %25 = sbr.rel (0) target = $region21
  $region20: #{resblock_forward.1} parent=0 // pred_region
    _
  $region21: #{resblock_forward.1} parent=0 // pred_fallthru
    _
  // Predicated region
  $region22: #{resblock_forward.1} parent=0 // pred_check
    _
  $region23: #{resblock_forward.1} parent=0 // pred_check_branch
    %27 = sbr.rel (0) target = $region25
  $region24: #{resblock_forward.1} parent=0 // pred_region
    _
  $region25: #{resblock_forward.1} parent=0 // pred_fallthru
    _
  // Predicated region
  $region26: #{resblock_forward.1} parent=0 // pred_check
    _
  $region27: #{resblock_forward.1} parent=0 // pred_check_branch
    %29 = sbr.rel (0) target = $region29
  $region28: #{resblock_forward.1} parent=0 // pred_region
    _
  $region29: #{resblock_forward.1} parent=0 // pred_fallthru
    _
  // Predicated region
  $region30: #{resblock_forward.1} parent=0 // pred_check
    _
  $region31: #{resblock_forward.1} parent=0 // pred_check_branch
    %31 = sbr.rel (0) target = $region33
  $region32: #{resblock_forward.1} parent=0 // pred_region
    _
  $region33: #{resblock_forward.1} parent=0 // pred_fallthru
    _
  // Predicated region
  $region34: #{resblock_forward.1} parent=0 // pred_check
    _
  $region35: #{resblock_forward.1} parent=0 // pred_check_branch
    %33 = sbr.rel (0) target = $region37
  $region36: #{resblock_forward.1} parent=0 // pred_region
    _
  $region37: #{resblock_forward.1} parent=0 // pred_fallthru
    _
  // Predicated region
  $region38: #{resblock_forward.1} parent=0 // pred_check
    _
  $region39: #{resblock_forward.1} parent=0 // pred_check_branch
    %35 = sbr.rel (0) target = $region41
  $region40: #{resblock_forward.1} parent=0 // pred_region
    _
  $region41: #{resblock_forward.1} parent=0 // pred_fallthru
    _
  // Predicated region
  $region42: #{resblock_forward.1} parent=0 // pred_check
    _
  $region43: #{resblock_forward.1} parent=0 // pred_check_branch
    %37 = sbr.rel (0) target = $region45
  $region44: #{resblock_forward.1} parent=0 // pred_region
    _
  $region45: #{resblock_forward.1} parent=0 // pred_fallthru
    _
  %v38 = vld [vmem:[%s0] sm:$0xff]
  %v39 = vld [vmem:[%s0 + $0x8] sm:$0xff]
  %v40 = vld [vmem:[%s0 + $0x10] sm:$0xff]
  %v41 = vld [vmem:[%s1] sm:$0x3f]
  %v42 = vld [vmem:[%s2] sm:$0xff]
  %v46 = vcombine.high %v38, %v38
  %v47 = vcombine.high %v39, %v39
  %v48 = vcombine.high %v40, %v40
  %52 = vrot.lane.b32.xlu0 %v38, 19
  %v53 = vpop.permute.xlu0 %52
  %54 = vrot.lane.b32.xlu0 %v46, 19
  %v55 = vpop.permute.xlu0 %54
  %56 = vrot.lane.b32.xlu0 %v39, 19
  %v57 = vpop.permute.xlu0 %56
  %58 = vrot.lane.b32.xlu0 %v47, 19
  %v59 = vpop.permute.xlu0 %58
  %60 = vrot.lane.b32.xlu0 %v40, 19
  %v61 = vpop.permute.xlu0 %60
  %62 = vrot.lane.b32.xlu0 %v48, 19
  %v63 = vpop.permute.xlu0 %62
  %v64 = vlaneseq
  %v65 = vand.u32 %v64, 127
  %vm66 = vcmp.lt.s32.totalorder %v65, 19
  %v67 = vsel %vm66, %v61, %v63
  %v68 = vsel %vm66, %v59, %v61
  %v69 = vsel %vm66, %v57, %v59
  %v70 = vsel %vm66, %v55, %v57
  %v71 = vsel %vm66, %v53, %v55
  %v72 = vsel %vm66, %v63, %v53
  %73 = vrot.lane.b32.xlu0 %v38, 18
  %v74 = vpop.permute.xlu0 %73
  %75 = vrot.lane.b32.xlu0 %v46, 18
  %v76 = vpop.permute.xlu0 %75
  %77 = vrot.lane.b32.xlu0 %v39, 18
  %v78 = vpop.permute.xlu0 %77
  %79 = vrot.lane.b32.xlu0 %v47, 18
  %v80 = vpop.permute.xlu0 %79
  %81 = vrot.lane.b32.xlu0 %v40, 18
  %v82 = vpop.permute.xlu0 %81
  %83 = vrot.lane.b32.xlu0 %v48, 18
  %v84 = vpop.permute.xlu0 %83
  %vm85 = vcmp.lt.s32.totalorder %v65, 18
  %v86 = vsel %vm85, %v82, %v84
  %v87 = vsel %vm85, %v80, %v82
  %v88 = vsel %vm85, %v78, %v80
  %v89 = vsel %vm85, %v76, %v78
  %v90 = vsel %vm85, %v74, %v76
  %v91 = vsel %vm85, %v84, %v74
  %92 = vrot.lane.b32.xlu0 %v38, 17
  %v93 = vpop.permute.xlu0 %92
  %94 = vrot.lane.b32.xlu0 %v46, 17
  %v95 = vpop.permute.xlu0 %94
  %96 = vrot.lane.b32.xlu0 %v39, 17
  %v97 = vpop.permute.xlu0 %96
  %98 = vrot.lane.b32.xlu0 %v47, 17
  %v99 = vpop.permute.xlu0 %98
  %100 = vrot.lane.b32.xlu0 %v40, 17
  %v101 = vpop.permute.xlu0 %100
  %102 = vrot.lane.b32.xlu0 %v48, 17
  %v103 = vpop.permute.xlu0 %102
  %vm104 = vcmp.lt.s32.totalorder %v65, 17
  %v105 = vsel %vm104, %v101, %v103
  %v106 = vsel %vm104, %v99, %v101
  %v107 = vsel %vm104, %v97, %v99
  %v108 = vsel %vm104, %v95, %v97
  %v109 = vsel %vm104, %v93, %v95
  %v110 = vsel %vm104, %v103, %v93
  %111 = vrot.lane.b32.xlu0 %v38, 1
  %v112 = vpop.permute.xlu0 %111
  %113 = vrot.lane.b32.xlu0 %v46, 1
  %v114 = vpop.permute.xlu0 %113
  %115 = vrot.lane.b32.xlu0 %v39, 1
  %v116 = vpop.permute.xlu0 %115
  %117 = vrot.lane.b32.xlu0 %v47, 1
  %v118 = vpop.permute.xlu0 %117
  %119 = vrot.lane.b32.xlu0 %v40, 1
  %v120 = vpop.permute.xlu0 %119
  %121 = vrot.lane.b32.xlu0 %v48, 1
  %v122 = vpop.permute.xlu0 %121
  %vm123 = vcmp.lt.s32.totalorder %v65, 1
  %v124 = vsel %vm123, %v120, %v122
  %v125 = vsel %vm123, %v118, %v120
  %v126 = vsel %vm123, %v116, %v118
  %v127 = vsel %vm123, %v114, %v116
  %v128 = vsel %vm123, %v112, %v114
  %v129 = vsel %vm123, %v122, %v112
  %130 = vrot.lane.b32.xlu0 %v38, 127
  %v131 = vpop.permute.xlu0 %130
  %132 = vrot.lane.b32.xlu0 %v46, 127
  %v133 = vpop.permute.xlu0 %132
  %134 = vrot.lane.b32.xlu0 %v39, 127
  %v135 = vpop.permute.xlu0 %134
  %136 = vrot.lane.b32.xlu0 %v47, 127
  %v137 = vpop.permute.xlu0 %136
  %138 = vrot.lane.b32.xlu0 %v40, 127
  %v139 = vpop.permute.xlu0 %138
  %140 = vrot.lane.b32.xlu0 %v48, 127
  %v141 = vpop.permute.xlu0 %140
  %vm142 = vcmp.lt.s32.totalorder %v65, 127
  %v143 = vsel %vm142, %v139, %v141
  %v144 = vsel %vm142, %v137, %v139
  %v145 = vsel %vm142, %v135, %v137
  %v146 = vsel %vm142, %v133, %v135
  %v147 = vsel %vm142, %v131, %v133
  %v148 = vsel %vm142, %v141, %v131
  %149 = vrot.lane.b32.xlu0 %v38, 111
  %v150 = vpop.permute.xlu0 %149
  %151 = vrot.lane.b32.xlu0 %v46, 111
  %v152 = vpop.permute.xlu0 %151
  %153 = vrot.lane.b32.xlu0 %v39, 111
  %v154 = vpop.permute.xlu0 %153
  %155 = vrot.lane.b32.xlu0 %v47, 111
  %v156 = vpop.permute.xlu0 %155
  %157 = vrot.lane.b32.xlu0 %v40, 111
  %v158 = vpop.permute.xlu0 %157
  %159 = vrot.lane.b32.xlu0 %v48, 111
  %v160 = vpop.permute.xlu0 %159
  %vm161 = vcmp.lt.s32.totalorder %v65, 111
  %v162 = vsel %vm161, %v158, %v160
  %v163 = vsel %vm161, %v156, %v158
  %v164 = vsel %vm161, %v154, %v156
  %v165 = vsel %vm161, %v152, %v154
  %v166 = vsel %vm161, %v150, %v152
  %v167 = vsel %vm161, %v160, %v150
  %168 = vrot.lane.b32.xlu0 %v38, 110
  %v169 = vpop.permute.xlu0 %168
  %170 = vrot.lane.b32.xlu0 %v46, 110
  %v171 = vpop.permute.xlu0 %170
  %172 = vrot.lane.b32.xlu0 %v39, 110
  %v173 = vpop.permute.xlu0 %172
  %174 = vrot.lane.b32.xlu0 %v47, 110
  %v175 = vpop.permute.xlu0 %174
  %176 = vrot.lane.b32.xlu0 %v40, 110
  %v177 = vpop.permute.xlu0 %176
  %178 = vrot.lane.b32.xlu0 %v48, 110
  %v179 = vpop.permute.xlu0 %178
  %vm180 = vcmp.lt.s32.totalorder %v65, 110
  %v181 = vsel %vm180, %v177, %v179
  %v182 = vsel %vm180, %v175, %v177
  %v183 = vsel %vm180, %v173, %v175
  %v184 = vsel %vm180, %v171, %v173
  %v185 = vsel %vm180, %v169, %v171
  %v186 = vsel %vm180, %v179, %v169
  %187 = vrot.lane.b32.xlu0 %v38, 109
  %v188 = vpop.permute.xlu0 %187
  %189 = vrot.lane.b32.xlu0 %v46, 109
  %v190 = vpop.permute.xlu0 %189
  %191 = vrot.lane.b32.xlu0 %v39, 109
  %v192 = vpop.permute.xlu0 %191
  %193 = vrot.lane.b32.xlu0 %v47, 109
  %v194 = vpop.permute.xlu0 %193
  %195 = vrot.lane.b32.xlu0 %v40, 109
  %v196 = vpop.permute.xlu0 %195
  %197 = vrot.lane.b32.xlu0 %v48, 109
  %v198 = vpop.permute.xlu0 %197
  %vm199 = vcmp.lt.s32.totalorder %v65, 109
  %v200 = vsel %vm199, %v196, %v198
  %v201 = vsel %vm199, %v194, %v196
  %v202 = vsel %vm199, %v192, %v194
  %v203 = vsel %vm199, %v190, %v192
  %v204 = vsel %vm199, %v188, %v190
  %v205 = vsel %vm199, %v198, %v188
  %v212 = vrot.slane %v91, 4
  %v213 = vrot.slane %v90, 4
  %v214 = vrot.slane %v89, 4
  %v215 = vrot.slane %v88, 4
  %v216 = vrot.slane %v87, 4
  %v217 = vrot.slane %v86, 4
  %v230 = vrot.slane %v129, 4
  %v231 = vrot.slane %v128, 4
  %v232 = vrot.slane %v127, 4
  %v233 = vrot.slane %v126, 4
  %v234 = vrot.slane %v125, 4
  %v235 = vrot.slane %v124, 4
  %v248 = vrot.slane %v147, 4
  %v249 = vrot.slane %v146, 4
  %v250 = vrot.slane %v145, 4
  %v251 = vrot.slane %v144, 4
  %v252 = vrot.slane %v143, 4
  %v253 = vrot.slane %v148, 4
  %v266 = vrot.slane %v185, 4
  %v267 = vrot.slane %v184, 4
  %v268 = vrot.slane %v183, 4
  %v269 = vrot.slane %v182, 4
  %v270 = vrot.slane %v181, 4
  %v271 = vrot.slane %v186, 4
  %vm278 = vcmask 1043456
  %v279 = vsel %vm278, %v72, %v212
  %v280 = vsel %vm278, %v71, %v213
  %v281 = vsel %vm278, %v70, %v214
  %v282 = vsel %vm278, %v69, %v215
  %v283 = vsel %vm278, %v68, %v216
  %v284 = vsel %vm278, %v67, %v217
  %v285 = vsel %vm278, %v110, %v230
  %v286 = vsel %vm278, %v109, %v231
  %v287 = vsel %vm278, %v108, %v232
  %v288 = vsel %vm278, %v107, %v233
  %v289 = vsel %vm278, %v106, %v234
  %v290 = vsel %vm278, %v105, %v235
  %v291 = vsel %vm278, %v38, %v248
  %v292 = vsel %vm278, %v46, %v249
  %v293 = vsel %vm278, %v39, %v250
  %v294 = vsel %vm278, %v47, %v251
  %v295 = vsel %vm278, %v40, %v252
  %v296 = vsel %vm278, %v48, %v253
  %v297 = vsel %vm278, %v166, %v266
  %v298 = vsel %vm278, %v165, %v267
  %v299 = vsel %vm278, %v164, %v268
  %v300 = vsel %vm278, %v163, %v269
  %v301 = vsel %vm278, %v162, %v270
  %v302 = vsel %vm278, %v167, %v271
  %vm303 = vcmask 293888
  %v305 = vsel %vm303, %v42, 0
  %v308 = vsel %vm278, %v204, 0
  %v311 = vsel %vm278, %v203, 0
  %v314 = vsel %vm278, %v202, 0
  %v317 = vsel %vm278, %v201, 0
  %v320 = vsel %vm278, %v200, 0
  %v323 = vsel %vm278, %v205, 0
  %325 = vmatprep.subr.mxu0 0.0
  %326 = vmatpush1.msra.mxu0 0.0
  %327 = vmatprep.subr.mxu0 0.0
  %328 = vmatpush1.msra.mxu0 0.0
  %329 = vmatprep.subr.mxu0 0.0
  %330 = vmatpush1.msra.mxu0 0.0
  %331 = vmatprep.subr.mxu0 0.0
  %332 = vmatpush1.msra.mxu0 0.0
  %333 = vmatprep.subr.mxu0 0.0
  %334 = vmatpush1.msra.mxu0 0.0
  %335 = vmatprep.subr.mxu0 0.0
  %336 = vmatpush1.msra.mxu0 0.0
  %337 = vmatprep.subr.mxu0 0.0
  %338 = vmatpush1.msra.mxu0 0.0
  %339 = vmatprep.subr.mxu0 0.0
  %340 = vmatpush1.msra.mxu0 0.0
  %341 = vmatprep.subr.mxu0 0.0
  %342 = vmatpush1.msra.mxu0 0.0
  %343 = vmatprep.subr.mxu0 0.0
  %344 = vmatpush1.msra.mxu0 0.0
  %345 = vmatprep.subr.mxu0 0.0
  %346 = vmatpush1.msra.mxu0 0.0
  %347 = vmatprep.subr.mxu0 %v311
  %348 = vmatpush1.msra.mxu0 %v308
  %349 = vmatprep.subr.mxu0 %v298
  %350 = vmatpush1.msra.mxu0 %v297
  %351 = vmatprep.subr.mxu0 %v292
  %352 = vmatpush1.msra.mxu0 %v291
  %353 = vmatprep.subr.mxu0 %v286
  %354 = vmatpush1.msra.mxu0 %v285
  %355 = vmatprep.subr.mxu0 %v280
  %356 = vmatpush1.msra.mxu0 %v279
  %357 = vmatprep.subr.mxu0 0.0
  %358 = vmatpush2.msra.mxu0 0.0
  %359 = vmatprep.subr.mxu0 0.0
  %360 = vmatpush2.msra.mxu0 0.0
  %361 = vmatprep.subr.mxu0 0.0
  %362 = vmatpush2.msra.mxu0 0.0
  %363 = vmatprep.subr.mxu0 0.0
  %364 = vmatpush2.msra.mxu0 0.0
  %365 = vmatprep.subr.mxu0 0.0
  %366 = vmatpush2.msra.mxu0 0.0
  %367 = vmatprep.subr.mxu0 0.0
  %368 = vmatpush2.msra.mxu0 0.0
  %369 = vmatprep.subr.mxu0 0.0
  %370 = vmatpush2.msra.mxu0 0.0
  %371 = vmatprep.subr.mxu0 0.0
  %372 = vmatpush2.msra.mxu0 0.0
  %373 = vmatprep.subr.mxu0 0.0
  %374 = vmatpush2.msra.mxu0 0.0
  %375 = vmatprep.subr.mxu0 0.0
  %376 = vmatpush2.msra.mxu0 0.0
  %377 = vmatprep.subr.mxu0 0.0
  %378 = vmatpush2.msra.mxu0 0.0
  %379 = vmatprep.subr.mxu0 0.0
  %380 = vmatpush2.msra.mxu0 0.0
  %381 = vmatprep.subr.mxu0 0.0
  %382 = vmatpush2.msra.mxu0 0.0
  %383 = vmatprep.subr.mxu0 0.0
  %384 = vmatpush2.msra.mxu0 0.0
  %385 = vmatprep.subr.mxu0 0.0
  %386 = vmatpush2.msra.mxu0 0.0
  %387 = vmatprep.subr.mxu0 0.0
  %388 = vmatpush2.msra.mxu0 0.0
  %389 = vmatprep.mubr.f32.mxu0 0.0
  %390 = vmatmul.mubr.f32.gmra.mxu0 %v305
  %v391 = vpop.f32.mrf.mxu0
  %v392 = vadd.f32 0.0, %v391
  %v393 = vpop.f32.mrf.mxu0
  %v394 = vadd.f32 0.0, %v393
  %395 = vdwg.mxu0
  %396 = vmatprep.subr.mxu0 0.0
  %397 = vmatpush1.msra.mxu0 0.0
  %398 = vmatprep.subr.mxu0 0.0
  %399 = vmatpush1.msra.mxu0 0.0
  %400 = vmatprep.subr.mxu0 0.0
  %401 = vmatpush1.msra.mxu0 0.0
  %402 = vmatprep.subr.mxu0 0.0
  %403 = vmatpush1.msra.mxu0 0.0
  %404 = vmatprep.subr.mxu0 0.0
  %405 = vmatpush1.msra.mxu0 0.0
  %406 = vmatprep.subr.mxu0 0.0
  %407 = vmatpush1.msra.mxu0 0.0
  %408 = vmatprep.subr.mxu0 0.0
  %409 = vmatpush1.msra.mxu0 0.0
  %410 = vmatprep.subr.mxu0 0.0
  %411 = vmatpush1.msra.mxu0 0.0
  %412 = vmatprep.subr.mxu0 0.0
  %413 = vmatpush1.msra.mxu0 0.0
  %414 = vmatprep.subr.mxu0 0.0
  %415 = vmatpush1.msra.mxu0 0.0
  %416 = vmatprep.subr.mxu0 0.0
  %417 = vmatpush1.msra.mxu0 0.0
  %418 = vmatprep.subr.mxu0 %v317
  %419 = vmatpush1.msra.mxu0 %v314
  %420 = vmatprep.subr.mxu0 %v300
  %421 = vmatpush1.msra.mxu0 %v299
  %422 = vmatprep.subr.mxu0 %v294
  %423 = vmatpush1.msra.mxu0 %v293
  %424 = vmatprep.subr.mxu0 %v288
  %425 = vmatpush1.msra.mxu0 %v287
  %426 = vmatprep.subr.mxu0 %v282
  %427 = vmatpush1.msra.mxu0 %v281
  %428 = vmatprep.subr.mxu0 0.0
  %429 = vmatpush2.msra.mxu0 0.0
  %430 = vmatprep.subr.mxu0 0.0
  %431 = vmatpush2.msra.mxu0 0.0
  %432 = vmatprep.subr.mxu0 0.0
  %433 = vmatpush2.msra.mxu0 0.0
  %434 = vmatprep.subr.mxu0 0.0
  %435 = vmatpush2.msra.mxu0 0.0
  %436 = vmatprep.subr.mxu0 0.0
  %437 = vmatpush2.msra.mxu0 0.0
  %438 = vmatprep.subr.mxu0 0.0
  %439 = vmatpush2.msra.mxu0 0.0
  %440 = vmatprep.subr.mxu0 0.0
  %441 = vmatpush2.msra.mxu0 0.0
  %442 = vmatprep.subr.mxu0 0.0
  %443 = vmatpush2.msra.mxu0 0.0
  %444 = vmatprep.subr.mxu0 0.0
  %445 = vmatpush2.msra.mxu0 0.0
  %446 = vmatprep.subr.mxu0 0.0
  %447 = vmatpush2.msra.mxu0 0.0
  %448 = vmatprep.subr.mxu0 0.0
  %449 = vmatpush2.msra.mxu0 0.0
  %450 = vmatprep.subr.mxu0 0.0
  %451 = vmatpush2.msra.mxu0 0.0
  %452 = vmatprep.subr.mxu0 0.0
  %453 = vmatpush2.msra.mxu0 0.0
  %454 = vmatprep.subr.mxu0 0.0
  %455 = vmatpush2.msra.mxu0 0.0
  %456 = vmatprep.subr.mxu0 0.0
  %457 = vmatpush2.msra.mxu0 0.0
  %458 = vmatprep.subr.mxu0 0.0
  %459 = vmatpush2.msra.mxu0 0.0
  %460 = vmatprep.mubr.f32.mxu0 0.0
  %461 = vmatmul.mubr.f32.gmra.mxu0 %v305
  %v462 = vpop.f32.mrf.mxu0
  %v463 = vadd.f32 0.0, %v462
  %v464 = vpop.f32.mrf.mxu0
  %v465 = vadd.f32 0.0, %v464
  %466 = vdwg.mxu0
  %467 = vmatprep.subr.mxu0 0.0
  %468 = vmatpush1.msra.mxu0 0.0
  %469 = vmatprep.subr.mxu0 0.0
  %470 = vmatpush1.msra.mxu0 0.0
  %471 = vmatprep.subr.mxu0 0.0
  %472 = vmatpush1.msra.mxu0 0.0
  %473 = vmatprep.subr.mxu0 0.0
  %474 = vmatpush1.msra.mxu0 0.0
  %475 = vmatprep.subr.mxu0 0.0
  %476 = vmatpush1.msra.mxu0 0.0
  %477 = vmatprep.subr.mxu0 0.0
  %478 = vmatpush1.msra.mxu0 0.0
  %479 = vmatprep.subr.mxu0 0.0
  %480 = vmatpush1.msra.mxu0 0.0
  %481 = vmatprep.subr.mxu0 0.0
  %482 = vmatpush1.msra.mxu0 0.0
  %483 = vmatprep.subr.mxu0 0.0
  %484 = vmatpush1.msra.mxu0 0.0
  %485 = vmatprep.subr.mxu0 0.0
  %486 = vmatpush1.msra.mxu0 0.0
  %487 = vmatprep.subr.mxu0 0.0
  %488 = vmatpush1.msra.mxu0 0.0
  %489 = vmatprep.subr.mxu0 %v323
  %490 = vmatpush1.msra.mxu0 %v320
  %491 = vmatprep.subr.mxu0 %v302
  %492 = vmatpush1.msra.mxu0 %v301
  %493 = vmatprep.subr.mxu0 %v296
  %494 = vmatpush1.msra.mxu0 %v295
  %495 = vmatprep.subr.mxu0 %v290
  %496 = vmatpush1.msra.mxu0 %v289
  %497 = vmatprep.subr.mxu0 %v284
  %498 = vmatpush1.msra.mxu0 %v283
  %499 = vmatprep.subr.mxu0 0.0
  %500 = vmatpush2.msra.mxu0 0.0
  %501 = vmatprep.subr.mxu0 0.0
  %502 = vmatpush2.msra.mxu0 0.0
  %503 = vmatprep.subr.mxu0 0.0
  %504 = vmatpush2.msra.mxu0 0.0
  %505 = vmatprep.subr.mxu0 0.0
  %506 = vmatpush2.msra.mxu0 0.0
  %507 = vmatprep.subr.mxu0 0.0
  %508 = vmatpush2.msra.mxu0 0.0
  %509 = vmatprep.subr.mxu0 0.0
  %510 = vmatpush2.msra.mxu0 0.0
  %511 = vmatprep.subr.mxu0 0.0
  %512 = vmatpush2.msra.mxu0 0.0
  %513 = vmatprep.subr.mxu0 0.0
  %514 = vmatpush2.msra.mxu0 0.0
  %515 = vmatprep.subr.mxu0 0.0
  %516 = vmatpush2.msra.mxu0 0.0
  %517 = vmatprep.subr.mxu0 0.0
  %518 = vmatpush2.msra.mxu0 0.0
  %519 = vmatprep.subr.mxu0 0.0
  %520 = vmatpush2.msra.mxu0 0.0
  %521 = vmatprep.subr.mxu0 0.0
  %522 = vmatpush2.msra.mxu0 0.0
  %523 = vmatprep.subr.mxu0 0.0
  %524 = vmatpush2.msra.mxu0 0.0
  %525 = vmatprep.subr.mxu0 0.0
  %526 = vmatpush2.msra.mxu0 0.0
  %527 = vmatprep.subr.mxu0 0.0
  %528 = vmatpush2.msra.mxu0 0.0
  %529 = vmatprep.subr.mxu0 0.0
  %530 = vmatpush2.msra.mxu0 0.0
  %531 = vmatprep.mubr.f32.mxu0 0.0
  %532 = vmatmul.mubr.f32.gmra.mxu0 %v305
  %v533 = vpop.f32.mrf.mxu0
  %v534 = vadd.f32 0.0, %v533
  %v535 = vpop.f32.mrf.mxu0
  %v536 = vadd.f32 0.0, %v535
  %537 = vdwg.mxu0
  %v538 = vld [vmem:[%s3] sm:$0xff]
  %v539 = vld [vmem:[%s4] sm:$0xff]
  %v541 = vlaneseq
  %v542 = vshrl.u32 %v541, 7
  %v543 = vsub.s32 0, %v542
  %v544 = vrot.slane %v41, %v543
  %v545 = vlaneseq
  %v546 = vshrl.u32 %v545, 7
  %v547 = vsub.s32 1, %v546
  %v548 = vrot.slane %v41, %v547
  %v549 = vlaneseq
  %v550 = vshrl.u32 %v549, 7
  %v551 = vsub.s32 2, %v550
  %v552 = vrot.slane %v41, %v551
  %v553 = vlaneseq
  %v554 = vshrl.u32 %v553, 7
  %v555 = vsub.s32 3, %v554
  %v556 = vrot.slane %v41, %v555
  %v557 = vlaneseq
  %v558 = vshrl.u32 %v557, 7
  %v559 = vsub.s32 4, %v558
  %v560 = vrot.slane %v41, %v559
  %v561 = vlaneseq
  %v562 = vshrl.u32 %v561, 7
  %v563 = vsub.s32 5, %v562
  %v564 = vrot.slane %v41, %v563
  %v571 = vmul.f32 %v392, %v544
  %v572 = vmul.f32 %v394, %v548
  %v573 = vmul.f32 %v463, %v552
  %v574 = vmul.f32 %v465, %v556
  %v575 = vmul.f32 %v534, %v560
  %v576 = vmul.f32 %v536, %v564
  %v577 = vadd.f32 %v571, %v572
  %v578 = vadd.f32 %v577, %v573
  %v579 = vadd.f32 %v578, %v574
  %v580 = vadd.f32 %v579, %v575
  %v581 = vadd.f32 %v580, %v576
  %582 = vadd.xlane.f32.xlu0 %v581
  %v583 = vpop.xlane.xlu0 %582
  %v584 = vmul.f32 %v571, %v571
  %v585 = vmul.f32 %v572, %v572
  %v586 = vmul.f32 %v573, %v573
  %v587 = vmul.f32 %v574, %v574
  %v588 = vmul.f32 %v575, %v575
  %v589 = vmul.f32 %v576, %v576
  %v590 = vadd.f32 %v584, %v585
  %v591 = vadd.f32 %v590, %v586
  %v592 = vadd.f32 %v591, %v587
  %v593 = vadd.f32 %v592, %v588
  %v594 = vadd.f32 %v593, %v589
  %595 = vadd.xlane.f32.xlu0 %v594
  %v596 = vpop.xlane.xlu0 %595
  %v597 = vmul.f32 %v583, 0.001953125
  %v598 = vmul.f32 %v596, 0.001953125
  %v599 = vmul.f32 %v597, %v597
  %v600 = vsub.f32 %v598, %v599
  %v601 = vadd.f32 %v600, 1e-05
  %v602 = vrsqrt.pop %v601
  %v603 = vmul.f32 %v538, %v602
  %v604 = vmul.f32 %v597, %v603
  %v605 = vsub.f32 %v539, %v604
  %607 = vset.pattern.permute.xlu0 0
  %608 = vperm.xlu0 %607, %v603
  %v609 = vpop.permute.xlu0 %608
  %v611 = vmul.f32 %v392, %v609
  %v612 = vmul.f32 %v394, %v609
  %v613 = vmul.f32 %v463, %v609
  %v614 = vmul.f32 %v465, %v609
  %v615 = vmul.f32 %v534, %v609
  %v616 = vmul.f32 %v536, %v609
  %618 = vset.pattern.permute.xlu0 0
  %619 = vperm.xlu0 %618, %v605
  %v620 = vpop.permute.xlu0 %619
  %v622 = vadd.f32 %v611, %v620
  %v623 = vadd.f32 %v612, %v620
  %v624 = vadd.f32 %v613, %v620
  %v625 = vadd.f32 %v614, %v620
  %v626 = vadd.f32 %v615, %v620
  %v627 = vadd.f32 %v616, %v620
  %v628 = vmax.f32 %v622, 0.0
  %v629 = vmax.f32 %v623, 0.0
  %v630 = vmax.f32 %v624, 0.0
  %v631 = vmax.f32 %v625, 0.0
  %v632 = vmax.f32 %v626, 0.0
  %v633 = vmax.f32 %v627, 0.0
  %v634 = vmul.f32 %v628, %v544
  %v635 = vmul.f32 %v629, %v548
  %v636 = vmul.f32 %v630, %v552
  %v637 = vmul.f32 %v631, %v556
  %v638 = vmul.f32 %v632, %v560
  %v639 = vmul.f32 %v633, %v564
  %v640 = vld [vmem:[%s5] sm:$0xff]
  %641 = vrot.lane.b32.xlu0 %v634, 19
  %v642 = vpop.permute.xlu0 %641
  %643 = vrot.lane.b32.xlu0 %v635, 19
  %v644 = vpop.permute.xlu0 %643
  %645 = vrot.lane.b32.xlu0 %v636, 19
  %v646 = vpop.permute.xlu0 %645
  %647 = vrot.lane.b32.xlu0 %v637, 19
  %v648 = vpop.permute.xlu0 %647
  %649 = vrot.lane.b32.xlu0 %v638, 19
  %v650 = vpop.permute.xlu0 %649
  %651 = vrot.lane.b32.xlu0 %v639, 19
  %v652 = vpop.permute.xlu0 %651
  %v653 = vsel %vm66, %v650, %v652
  %v654 = vsel %vm66, %v648, %v650
  %v655 = vsel %vm66, %v646, %v648
  %v656 = vsel %vm66, %v644, %v646
  %v657 = vsel %vm66, %v642, %v644
  %v658 = vsel %vm66, %v652, %v642
  %659 = vrot.lane.b32.xlu0 %v634, 18
  %v660 = vpop.permute.xlu0 %659
  %661 = vrot.lane.b32.xlu0 %v635, 18
  %v662 = vpop.permute.xlu0 %661
  %663 = vrot.lane.b32.xlu0 %v636, 18
  %v664 = vpop.permute.xlu0 %663
  %665 = vrot.lane.b32.xlu0 %v637, 18
  %v666 = vpop.permute.xlu0 %665
  %667 = vrot.lane.b32.xlu0 %v638, 18
  %v668 = vpop.permute.xlu0 %667
  %669 = vrot.lane.b32.xlu0 %v639, 18
  %v670 = vpop.permute.xlu0 %669
  %v671 = vsel %vm85, %v668, %v670
  %v672 = vsel %vm85, %v666, %v668
  %v673 = vsel %vm85, %v664, %v666
  %v674 = vsel %vm85, %v662, %v664
  %v675 = vsel %vm85, %v660, %v662
  %v676 = vsel %vm85, %v670, %v660
  %677 = vrot.lane.b32.xlu0 %v634, 17
  %v678 = vpop.permute.xlu0 %677
  %679 = vrot.lane.b32.xlu0 %v635, 17
  %v680 = vpop.permute.xlu0 %679
  %681 = vrot.lane.b32.xlu0 %v636, 17
  %v682 = vpop.permute.xlu0 %681
  %683 = vrot.lane.b32.xlu0 %v637, 17
  %v684 = vpop.permute.xlu0 %683
  %685 = vrot.lane.b32.xlu0 %v638, 17
  %v686 = vpop.permute.xlu0 %685
  %687 = vrot.lane.b32.xlu0 %v639, 17
  %v688 = vpop.permute.xlu0 %687
  %v689 = vsel %vm104, %v686, %v688
  %v690 = vsel %vm104, %v684, %v686
  %v691 = vsel %vm104, %v682, %v684
  %v692 = vsel %vm104, %v680, %v682
  %v693 = vsel %vm104, %v678, %v680
  %v694 = vsel %vm104, %v688, %v678
  %695 = vrot.lane.b32.xlu0 %v634, 1
  %v696 = vpop.permute.xlu0 %695
  %697 = vrot.lane.b32.xlu0 %v635, 1
  %v698 = vpop.permute.xlu0 %697
  %699 = vrot.lane.b32.xlu0 %v636, 1
  %v700 = vpop.permute.xlu0 %699
  %701 = vrot.lane.b32.xlu0 %v637, 1
  %v702 = vpop.permute.xlu0 %701
  %703 = vrot.lane.b32.xlu0 %v638, 1
  %v704 = vpop.permute.xlu0 %703
  %705 = vrot.lane.b32.xlu0 %v639, 1
  %v706 = vpop.permute.xlu0 %705
  %v707 = vsel %vm123, %v704, %v706
  %v708 = vsel %vm123, %v702, %v704
  %v709 = vsel %vm123, %v700, %v702
  %v710 = vsel %vm123, %v698, %v700
  %v711 = vsel %vm123, %v696, %v698
  %v712 = vsel %vm123, %v706, %v696
  %713 = vrot.lane.b32.xlu0 %v634, 127
  %v714 = vpop.permute.xlu0 %713
  %715 = vrot.lane.b32.xlu0 %v635, 127
  %v716 = vpop.permute.xlu0 %715
  %717 = vrot.lane.b32.xlu0 %v636, 127
  %v718 = vpop.permute.xlu0 %717
  %719 = vrot.lane.b32.xlu0 %v637, 127
  %v720 = vpop.permute.xlu0 %719
  %721 = vrot.lane.b32.xlu0 %v638, 127
  %v722 = vpop.permute.xlu0 %721
  %723 = vrot.lane.b32.xlu0 %v639, 127
  %v724 = vpop.permute.xlu0 %723
  %v725 = vsel %vm142, %v722, %v724
  %v726 = vsel %vm142, %v720, %v722
  %v727 = vsel %vm142, %v718, %v720
  %v728 = vsel %vm142, %v716, %v718
  %v729 = vsel %vm142, %v714, %v716
  %v730 = vsel %vm142, %v724, %v714
  %731 = vrot.lane.b32.xlu0 %v634, 111
  %v732 = vpop.permute.xlu0 %731
  %733 = vrot.lane.b32.xlu0 %v635, 111
  %v734 = vpop.permute.xlu0 %733
  %735 = vrot.lane.b32.xlu0 %v636, 111
  %v736 = vpop.permute.xlu0 %735
  %737 = vrot.lane.b32.xlu0 %v637, 111
  %v738 = vpop.permute.xlu0 %737
  %739 = vrot.lane.b32.xlu0 %v638, 111
  %v740 = vpop.permute.xlu0 %739
  %741 = vrot.lane.b32.xlu0 %v639, 111
  %v742 = vpop.permute.xlu0 %741
  %v743 = vsel %vm161, %v740, %v742
  %v744 = vsel %vm161, %v738, %v740
  %v745 = vsel %vm161, %v736, %v738
  %v746 = vsel %vm161, %v734, %v736
  %v747 = vsel %vm161, %v732, %v734
  %v748 = vsel %vm161, %v742, %v732
  %749 = vrot.lane.b32.xlu0 %v634, 110
  %v750 = vpop.permute.xlu0 %749
  %751 = vrot.lane.b32.xlu0 %v635, 110
  %v752 = vpop.permute.xlu0 %751
  %753 = vrot.lane.b32.xlu0 %v636, 110
  %v754 = vpop.permute.xlu0 %753
  %755 = vrot.lane.b32.xlu0 %v637, 110
  %v756 = vpop.permute.xlu0 %755
  %757 = vrot.lane.b32.xlu0 %v638, 110
  %v758 = vpop.permute.xlu0 %757
  %759 = vrot.lane.b32.xlu0 %v639, 110
  %v760 = vpop.permute.xlu0 %759
  %v761 = vsel %vm180, %v758, %v760
  %v762 = vsel %vm180, %v756, %v758
  %v763 = vsel %vm180, %v754, %v756
  %v764 = vsel %vm180, %v752, %v754
  %v765 = vsel %vm180, %v750, %v752
  %v766 = vsel %vm180, %v760, %v750
  %767 = vrot.lane.b32.xlu0 %v634, 109
  %v768 = vpop.permute.xlu0 %767
  %769 = vrot.lane.b32.xlu0 %v635, 109
  %v770 = vpop.permute.xlu0 %769
  %771 = vrot.lane.b32.xlu0 %v636, 109
  %v772 = vpop.permute.xlu0 %771
  %773 = vrot.lane.b32.xlu0 %v637, 109
  %v774 = vpop.permute.xlu0 %773
  %775 = vrot.lane.b32.xlu0 %v638, 109
  %v776 = vpop.permute.xlu0 %775
  %777 = vrot.lane.b32.xlu0 %v639, 109
  %v778 = vpop.permute.xlu0 %777
  %v779 = vsel %vm199, %v776, %v778
  %v780 = vsel %vm199, %v774, %v776
  %v781 = vsel %vm199, %v772, %v774
  %v782 = vsel %vm199, %v770, %v772
  %v783 = vsel %vm199, %v768, %v770
  %v784 = vsel %vm199, %v778, %v768
  %vm785 = vcmask 588800
  %v787 = vsel %vm785, %v640, 0
  %789 = vmatprep.subr.mxu0 0.0
  %790 = vmatpush1.msra.mxu0 0.0
  %791 = vmatprep.subr.mxu0 0.0
  %792 = vmatpush1.msra.mxu0 0.0
  %793 = vmatprep.subr.mxu0 0.0
  %794 = vmatpush1.msra.mxu0 0.0
  %795 = vmatprep.subr.mxu0 0.0
  %796 = vmatpush1.msra.mxu0 0.0
  %797 = vmatprep.subr.mxu0 0.0
  %798 = vmatpush1.msra.mxu0 0.0
  %799 = vmatprep.subr.mxu0 0.0
  %800 = vmatpush1.msra.mxu0 0.0
  %801 = vmatprep.subr.mxu0 0.0
  %802 = vmatpush1.msra.mxu0 0.0
  %803 = vmatprep.subr.mxu0 %v782
  %804 = vmatpush1.msra.mxu0 %v783
  %805 = vmatprep.subr.mxu0 %v764
  %806 = vmatpush1.msra.mxu0 %v765
  %807 = vmatprep.subr.mxu0 %v746
  %808 = vmatpush1.msra.mxu0 %v747
  %809 = vmatprep.subr.mxu0 %v728
  %810 = vmatpush1.msra.mxu0 %v729
  %811 = vmatprep.subr.mxu0 %v635
  %812 = vmatpush1.msra.mxu0 %v634
  %813 = vmatprep.subr.mxu0 %v711
  %814 = vmatpush1.msra.mxu0 %v712
  %815 = vmatprep.subr.mxu0 %v693
  %816 = vmatpush1.msra.mxu0 %v694
  %817 = vmatprep.subr.mxu0 %v675
  %818 = vmatpush1.msra.mxu0 %v676
  %819 = vmatprep.subr.mxu0 %v657
  %820 = vmatpush1.msra.mxu0 %v658
  %821 = vmatprep.subr.mxu0 0.0
  %822 = vmatpush2.msra.mxu0 0.0
  %823 = vmatprep.subr.mxu0 0.0
  %824 = vmatpush2.msra.mxu0 0.0
  %825 = vmatprep.subr.mxu0 0.0
  %826 = vmatpush2.msra.mxu0 0.0
  %827 = vmatprep.subr.mxu0 0.0
  %828 = vmatpush2.msra.mxu0 0.0
  %829 = vmatprep.subr.mxu0 0.0
  %830 = vmatpush2.msra.mxu0 0.0
  %831 = vmatprep.subr.mxu0 0.0
  %832 = vmatpush2.msra.mxu0 0.0
  %833 = vmatprep.subr.mxu0 0.0
  %834 = vmatpush2.msra.mxu0 0.0
  %835 = vmatprep.subr.mxu0 0.0
  %836 = vmatpush2.msra.mxu0 0.0
  %837 = vmatprep.subr.mxu0 0.0
  %838 = vmatpush2.msra.mxu0 0.0
  %839 = vmatprep.subr.mxu0 0.0
  %840 = vmatpush2.msra.mxu0 0.0
  %841 = vmatprep.subr.mxu0 0.0
  %842 = vmatpush2.msra.mxu0 0.0
  %843 = vmatprep.subr.mxu0 0.0
  %844 = vmatpush2.msra.mxu0 0.0
  %845 = vmatprep.subr.mxu0 0.0
  %846 = vmatpush2.msra.mxu0 0.0
  %847 = vmatprep.subr.mxu0 0.0
  %848 = vmatpush2.msra.mxu0 0.0
  %849 = vmatprep.subr.mxu0 0.0
  %850 = vmatpush2.msra.mxu0 0.0
  %851 = vmatprep.subr.mxu0 0.0
  %852 = vmatpush2.msra.mxu0 0.0
  %853 = vmatprep.mubr.f32.mxu0 0.0
  %854 = vmatmul.mubr.f32.gmra.mxu0 %v787
  %v855 = vpop.f32.mrf.mxu0
  %v856 = vadd.f32 0.0, %v855
  %v857 = vpop.f32.mrf.mxu0
  %v858 = vadd.f32 0.0, %v857
  %859 = vdwg.mxu0
  %860 = vmatprep.subr.mxu0 0.0
  %861 = vmatpush1.msra.mxu0 0.0
  %862 = vmatprep.subr.mxu0 0.0
  %863 = vmatpush1.msra.mxu0 0.0
  %864 = vmatprep.subr.mxu0 0.0
  %865 = vmatpush1.msra.mxu0 0.0
  %866 = vmatprep.subr.mxu0 0.0
  %867 = vmatpush1.msra.mxu0 0.0
  %868 = vmatprep.subr.mxu0 0.0
  %869 = vmatpush1.msra.mxu0 0.0
  %870 = vmatprep.subr.mxu0 0.0
  %871 = vmatpush1.msra.mxu0 0.0
  %872 = vmatprep.subr.mxu0 0.0
  %873 = vmatpush1.msra.mxu0 0.0
  %874 = vmatprep.subr.mxu0 %v780
  %875 = vmatpush1.msra.mxu0 %v781
  %876 = vmatprep.subr.mxu0 %v762
  %877 = vmatpush1.msra.mxu0 %v763
  %878 = vmatprep.subr.mxu0 %v744
  %879 = vmatpush1.msra.mxu0 %v745
  %880 = vmatprep.subr.mxu0 %v726
  %881 = vmatpush1.msra.mxu0 %v727
  %882 = vmatprep.subr.mxu0 %v637
  %883 = vmatpush1.msra.mxu0 %v636
  %884 = vmatprep.subr.mxu0 %v709
  %885 = vmatpush1.msra.mxu0 %v710
  %886 = vmatprep.subr.mxu0 %v691
  %887 = vmatpush1.msra.mxu0 %v692
  %888 = vmatprep.subr.mxu0 %v673
  %889 = vmatpush1.msra.mxu0 %v674
  %890 = vmatprep.subr.mxu0 %v655
  %891 = vmatpush1.msra.mxu0 %v656
  %892 = vmatprep.subr.mxu0 0.0
  %893 = vmatpush2.msra.mxu0 0.0
  %894 = vmatprep.subr.mxu0 0.0
  %895 = vmatpush2.msra.mxu0 0.0
  %896 = vmatprep.subr.mxu0 0.0
  %897 = vmatpush2.msra.mxu0 0.0
  %898 = vmatprep.subr.mxu0 0.0
  %899 = vmatpush2.msra.mxu0 0.0
  %900 = vmatprep.subr.mxu0 0.0
  %901 = vmatpush2.msra.mxu0 0.0
  %902 = vmatprep.subr.mxu0 0.0
  %903 = vmatpush2.msra.mxu0 0.0
  %904 = vmatprep.subr.mxu0 0.0
  %905 = vmatpush2.msra.mxu0 0.0
  %906 = vmatprep.subr.mxu0 0.0
  %907 = vmatpush2.msra.mxu0 0.0
  %908 = vmatprep.subr.mxu0 0.0
  %909 = vmatpush2.msra.mxu0 0.0
  %910 = vmatprep.subr.mxu0 0.0
  %911 = vmatpush2.msra.mxu0 0.0
  %912 = vmatprep.subr.mxu0 0.0
  %913 = vmatpush2.msra.mxu0 0.0
  %914 = vmatprep.subr.mxu0 0.0
  %915 = vmatpush2.msra.mxu0 0.0
  %916 = vmatprep.subr.mxu0 0.0
  %917 = vmatpush2.msra.mxu0 0.0
  %918 = vmatprep.subr.mxu0 0.0
  %919 = vmatpush2.msra.mxu0 0.0
  %920 = vmatprep.subr.mxu0 0.0
  %921 = vmatpush2.msra.mxu0 0.0
  %922 = vmatprep.subr.mxu0 0.0
  %923 = vmatpush2.msra.mxu0 0.0
  %924 = vmatprep.mubr.f32.mxu0 0.0
  %925 = vmatmul.mubr.f32.gmra.mxu0 %v787
  %v926 = vpop.f32.mrf.mxu0
  %v927 = vadd.f32 0.0, %v926
  %v928 = vpop.f32.mrf.mxu0
  %v929 = vadd.f32 0.0, %v928
  %930 = vdwg.mxu0
  %931 = vmatprep.subr.mxu0 0.0
  %932 = vmatpush1.msra.mxu0 0.0
  %933 = vmatprep.subr.mxu0 0.0
  %934 = vmatpush1.msra.mxu0 0.0
  %935 = vmatprep.subr.mxu0 0.0
  %936 = vmatpush1.msra.mxu0 0.0
  %937 = vmatprep.subr.mxu0 0.0
  %938 = vmatpush1.msra.mxu0 0.0
  %939 = vmatprep.subr.mxu0 0.0
  %940 = vmatpush1.msra.mxu0 0.0
  %941 = vmatprep.subr.mxu0 0.0
  %942 = vmatpush1.msra.mxu0 0.0
  %943 = vmatprep.subr.mxu0 0.0
  %944 = vmatpush1.msra.mxu0 0.0
  %945 = vmatprep.subr.mxu0 %v784
  %946 = vmatpush1.msra.mxu0 %v779
  %947 = vmatprep.subr.mxu0 %v766
  %948 = vmatpush1.msra.mxu0 %v761
  %949 = vmatprep.subr.mxu0 %v748
  %950 = vmatpush1.msra.mxu0 %v743
  %951 = vmatprep.subr.mxu0 %v730
  %952 = vmatpush1.msra.mxu0 %v725
  %953 = vmatprep.subr.mxu0 %v639
  %954 = vmatpush1.msra.mxu0 %v638
  %955 = vmatprep.subr.mxu0 %v707
  %956 = vmatpush1.msra.mxu0 %v708
  %957 = vmatprep.subr.mxu0 %v689
  %958 = vmatpush1.msra.mxu0 %v690
  %959 = vmatprep.subr.mxu0 %v671
  %960 = vmatpush1.msra.mxu0 %v672
  %961 = vmatprep.subr.mxu0 %v653
  %962 = vmatpush1.msra.mxu0 %v654
  %963 = vmatprep.subr.mxu0 0.0
  %964 = vmatpush2.msra.mxu0 0.0
  %965 = vmatprep.subr.mxu0 0.0
  %966 = vmatpush2.msra.mxu0 0.0
  %967 = vmatprep.subr.mxu0 0.0
  %968 = vmatpush2.msra.mxu0 0.0
  %969 = vmatprep.subr.mxu0 0.0
  %970 = vmatpush2.msra.mxu0 0.0
  %971 = vmatprep.subr.mxu0 0.0
  %972 = vmatpush2.msra.mxu0 0.0
  %973 = vmatprep.subr.mxu0 0.0
  %974 = vmatpush2.msra.mxu0 0.0
  %975 = vmatprep.subr.mxu0 0.0
  %976 = vmatpush2.msra.mxu0 0.0
  %977 = vmatprep.subr.mxu0 0.0
  %978 = vmatpush2.msra.mxu0 0.0
  %979 = vmatprep.subr.mxu0 0.0
  %980 = vmatpush2.msra.mxu0 0.0
  %981 = vmatprep.subr.mxu0 0.0
  %982 = vmatpush2.msra.mxu0 0.0
  %983 = vmatprep.subr.mxu0 0.0
  %984 = vmatpush2.msra.mxu0 0.0
  %985 = vmatprep.subr.mxu0 0.0
  %986 = vmatpush2.msra.mxu0 0.0
  %987 = vmatprep.subr.mxu0 0.0
  %988 = vmatpush2.msra.mxu0 0.0
  %989 = vmatprep.subr.mxu0 0.0
  %990 = vmatpush2.msra.mxu0 0.0
  %991 = vmatprep.subr.mxu0 0.0
  %992 = vmatpush2.msra.mxu0 0.0
  %993 = vmatprep.subr.mxu0 0.0
  %994 = vmatpush2.msra.mxu0 0.0
  %995 = vmatprep.mubr.f32.mxu0 0.0
  %996 = vmatmul.mubr.f32.gmra.mxu0 %v787
  %v997 = vpop.f32.mrf.mxu0
  %v998 = vadd.f32 0.0, %v997
  %v999 = vpop.f32.mrf.mxu0
  %v1000 = vadd.f32 0.0, %v999
  %1001 = vdwg.mxu0
  %v1002 = vld [vmem:[%s6] sm:$0xff]
  %v1003 = vld [vmem:[%s7] sm:$0xff]
  %v1004 = vmul.f32 %v856, %v544
  %v1005 = vmul.f32 %v858, %v548
  %v1006 = vmul.f32 %v927, %v552
  %v1007 = vmul.f32 %v929, %v556
  %v1008 = vmul.f32 %v998, %v560
  %v1009 = vmul.f32 %v1000, %v564
  %v1010 = vadd.f32 %v1004, %v1005
  %v1011 = vadd.f32 %v1010, %v1006
  %v1012 = vadd.f32 %v1011, %v1007
  %v1013 = vadd.f32 %v1012, %v1008
  %v1014 = vadd.f32 %v1013, %v1009
  %1015 = vadd.xlane.f32.xlu0 %v1014
  %v1016 = vpop.xlane.xlu0 %1015
  %v1017 = vmul.f32 %v1004, %v1004
  %v1018 = vmul.f32 %v1005, %v1005
  %v1019 = vmul.f32 %v1006, %v1006
  %v1020 = vmul.f32 %v1007, %v1007
  %v1021 = vmul.f32 %v1008, %v1008
  %v1022 = vmul.f32 %v1009, %v1009
  %v1023 = vadd.f32 %v1017, %v1018
  %v1024 = vadd.f32 %v1023, %v1019
  %v1025 = vadd.f32 %v1024, %v1020
  %v1026 = vadd.f32 %v1025, %v1021
  %v1027 = vadd.f32 %v1026, %v1022
  %1028 = vadd.xlane.f32.xlu0 %v1027
  %v1029 = vpop.xlane.xlu0 %1028
  %v1030 = vmul.f32 %v1016, 0.001953125
  %v1031 = vmul.f32 %v1029, 0.001953125
  %v1032 = vmul.f32 %v1030, %v1030
  %v1033 = vsub.f32 %v1031, %v1032
  %v1034 = vadd.f32 %v1033, 1e-05
  %v1035 = vrsqrt.pop %v1034
  %v1036 = vmul.f32 %v1002, %v1035
  %v1037 = vmul.f32 %v1030, %v1036
  %v1038 = vsub.f32 %v1003, %v1037
  %1040 = vset.pattern.permute.xlu0 0
  %1041 = vperm.xlu0 %1040, %v1036
  %v1042 = vpop.permute.xlu0 %1041
  %v1044 = vmul.f32 %v856, %v1042
  %v1045 = vmul.f32 %v858, %v1042
  %v1046 = vmul.f32 %v927, %v1042
  %v1047 = vmul.f32 %v929, %v1042
  %v1048 = vmul.f32 %v998, %v1042
  %v1049 = vmul.f32 %v1000, %v1042
  %1051 = vset.pattern.permute.xlu0 0
  %1052 = vperm.xlu0 %1051, %v1038
  %v1053 = vpop.permute.xlu0 %1052
  %v1055 = vadd.f32 %v1044, %v1053
  %v1056 = vadd.f32 %v1045, %v1053
  %v1057 = vadd.f32 %v1046, %v1053
  %v1058 = vadd.f32 %v1047, %v1053
  %v1059 = vadd.f32 %v1048, %v1053
  %v1060 = vadd.f32 %v1049, %v1053
  %v1061 = vld [vmem:[%s8] sm:$0xff]
  %vm1062 = vcmask 31744
  %v1064 = vsel %vm1062, %v1061, 0
  %v1066 = vsel %vm278, %v38, 0
  %v1068 = vsel %vm278, %v46, 0
  %v1070 = vsel %vm278, %v39, 0
  %v1072 = vsel %vm278, %v47, 0
  %v1074 = vsel %vm278, %v40, 0
  %v1076 = vsel %vm278, %v48, 0
  %1078 = vmatprep.subr.mxu0 0.0
  %1079 = vmatpush1.msra.mxu0 0.0
  %1080 = vmatprep.subr.mxu0 0.0
  %1081 = vmatpush1.msra.mxu0 0.0
  %1082 = vmatprep.subr.mxu0 0.0
  %1083 = vmatpush1.msra.mxu0 0.0
  %1084 = vmatprep.subr.mxu0 0.0
  %1085 = vmatpush1.msra.mxu0 0.0
  %1086 = vmatprep.subr.mxu0 0.0
  %1087 = vmatpush1.msra.mxu0 0.0
  %1088 = vmatprep.subr.mxu0 0.0
  %1089 = vmatpush1.msra.mxu0 0.0
  %1090 = vmatprep.subr.mxu0 0.0
  %1091 = vmatpush1.msra.mxu0 0.0
  %1092 = vmatprep.subr.mxu0 0.0
  %1093 = vmatpush1.msra.mxu0 0.0
  %1094 = vmatprep.subr.mxu0 0.0
  %1095 = vmatpush1.msra.mxu0 0.0
  %1096 = vmatprep.subr.mxu0 0.0
  %1097 = vmatpush1.msra.mxu0 0.0
  %1098 = vmatprep.subr.mxu0 0.0
  %1099 = vmatpush1.msra.mxu0 0.0
  %1100 = vmatprep.subr.mxu0 0.0
  %1101 = vmatpush1.msra.mxu0 0.0
  %1102 = vmatprep.subr.mxu0 0.0
  %1103 = vmatpush1.msra.mxu0 0.0
  %1104 = vmatprep.subr.mxu0 0.0
  %1105 = vmatpush1.msra.mxu0 0.0
  %1106 = vmatprep.subr.mxu0 0.0
  %1107 = vmatpush1.msra.mxu0 0.0
  %1108 = vmatprep.subr.mxu0 %v1068
  %1109 = vmatpush1.msra.mxu0 %v1066
  %1110 = vmatprep.subr.mxu0 0.0
  %1111 = vmatpush2.msra.mxu0 0.0
  %1112 = vmatprep.subr.mxu0 0.0
  %1113 = vmatpush2.msra.mxu0 0.0
  %1114 = vmatprep.subr.mxu0 0.0
  %1115 = vmatpush2.msra.mxu0 0.0
  %1116 = vmatprep.subr.mxu0 0.0
  %1117 = vmatpush2.msra.mxu0 0.0
  %1118 = vmatprep.subr.mxu0 0.0
  %1119 = vmatpush2.msra.mxu0 0.0
  %1120 = vmatprep.subr.mxu0 0.0
  %1121 = vmatpush2.msra.mxu0 0.0
  %1122 = vmatprep.subr.mxu0 0.0
  %1123 = vmatpush2.msra.mxu0 0.0
  %1124 = vmatprep.subr.mxu0 0.0
  %1125 = vmatpush2.msra.mxu0 0.0
  %1126 = vmatprep.subr.mxu0 0.0
  %1127 = vmatpush2.msra.mxu0 0.0
  %1128 = vmatprep.subr.mxu0 0.0
  %1129 = vmatpush2.msra.mxu0 0.0
  %1130 = vmatprep.subr.mxu0 0.0
  %1131 = vmatpush2.msra.mxu0 0.0
  %1132 = vmatprep.subr.mxu0 0.0
  %1133 = vmatpush2.msra.mxu0 0.0
  %1134 = vmatprep.subr.mxu0 0.0
  %1135 = vmatpush2.msra.mxu0 0.0
  %1136 = vmatprep.subr.mxu0 0.0
  %1137 = vmatpush2.msra.mxu0 0.0
  %1138 = vmatprep.subr.mxu0 0.0
  %1139 = vmatpush2.msra.mxu0 0.0
  %1140 = vmatprep.subr.mxu0 0.0
  %1141 = vmatpush2.msra.mxu0 0.0
  %1142 = vmatprep.mubr.f32.mxu0 0.0
  %1143 = vmatmul.mubr.f32.gmra.mxu0 %v1064
  %v1144 = vpop.f32.mrf.mxu0
  %v1145 = vadd.f32 0.0, %v1144
  %v1146 = vpop.f32.mrf.mxu0
  %v1147 = vadd.f32 0.0, %v1146
  %1148 = vdwg.mxu0
  %1149 = vmatprep.subr.mxu0 0.0
  %1150 = vmatpush1.msra.mxu0 0.0
  %1151 = vmatprep.subr.mxu0 0.0
  %1152 = vmatpush1.msra.mxu0 0.0
  %1153 = vmatprep.subr.mxu0 0.0
  %1154 = vmatpush1.msra.mxu0 0.0
  %1155 = vmatprep.subr.mxu0 0.0
  %1156 = vmatpush1.msra.mxu0 0.0
  %1157 = vmatprep.subr.mxu0 0.0
  %1158 = vmatpush1.msra.mxu0 0.0
  %1159 = vmatprep.subr.mxu0 0.0
  %1160 = vmatpush1.msra.mxu0 0.0
  %1161 = vmatprep.subr.mxu0 0.0
  %1162 = vmatpush1.msra.mxu0 0.0
  %1163 = vmatprep.subr.mxu0 0.0
  %1164 = vmatpush1.msra.mxu0 0.0
  %1165 = vmatprep.subr.mxu0 0.0
  %1166 = vmatpush1.msra.mxu0 0.0
  %1167 = vmatprep.subr.mxu0 0.0
  %1168 = vmatpush1.msra.mxu0 0.0
  %1169 = vmatprep.subr.mxu0 0.0
  %1170 = vmatpush1.msra.mxu0 0.0
  %1171 = vmatprep.subr.mxu0 0.0
  %1172 = vmatpush1.msra.mxu0 0.0
  %1173 = vmatprep.subr.mxu0 0.0
  %1174 = vmatpush1.msra.mxu0 0.0
  %1175 = vmatprep.subr.mxu0 0.0
  %1176 = vmatpush1.msra.mxu0 0.0
  %1177 = vmatprep.subr.mxu0 0.0
  %1178 = vmatpush1.msra.mxu0 0.0
  %1179 = vmatprep.subr.mxu0 %v1072
  %1180 = vmatpush1.msra.mxu0 %v1070
  %1181 = vmatprep.subr.mxu0 0.0
  %1182 = vmatpush2.msra.mxu0 0.0
  %1183 = vmatprep.subr.mxu0 0.0
  %1184 = vmatpush2.msra.mxu0 0.0
  %1185 = vmatprep.subr.mxu0 0.0
  %1186 = vmatpush2.msra.mxu0 0.0
  %1187 = vmatprep.subr.mxu0 0.0
  %1188 = vmatpush2.msra.mxu0 0.0
  %1189 = vmatprep.subr.mxu0 0.0
  %1190 = vmatpush2.msra.mxu0 0.0
  %1191 = vmatprep.subr.mxu0 0.0
  %1192 = vmatpush2.msra.mxu0 0.0
  %1193 = vmatprep.subr.mxu0 0.0
  %1194 = vmatpush2.msra.mxu0 0.0
  %1195 = vmatprep.subr.mxu0 0.0
  %1196 = vmatpush2.msra.mxu0 0.0
  %1197 = vmatprep.subr.mxu0 0.0
  %1198 = vmatpush2.msra.mxu0 0.0
  %1199 = vmatprep.subr.mxu0 0.0
  %1200 = vmatpush2.msra.mxu0 0.0
  %1201 = vmatprep.subr.mxu0 0.0
  %1202 = vmatpush2.msra.mxu0 0.0
  %1203 = vmatprep.subr.mxu0 0.0
  %1204 = vmatpush2.msra.mxu0 0.0
  %1205 = vmatprep.subr.mxu0 0.0
  %1206 = vmatpush2.msra.mxu0 0.0
  %1207 = vmatprep.subr.mxu0 0.0
  %1208 = vmatpush2.msra.mxu0 0.0
  %1209 = vmatprep.subr.mxu0 0.0
  %1210 = vmatpush2.msra.mxu0 0.0
  %1211 = vmatprep.subr.mxu0 0.0
  %1212 = vmatpush2.msra.mxu0 0.0
  %1213 = vmatprep.mubr.f32.mxu0 0.0
  %1214 = vmatmul.mubr.f32.gmra.mxu0 %v1064
  %v1215 = vpop.f32.mrf.mxu0
  %v1216 = vadd.f32 0.0, %v1215
  %v1217 = vpop.f32.mrf.mxu0
  %v1218 = vadd.f32 0.0, %v1217
  %1219 = vdwg.mxu0
  %1220 = vmatprep.subr.mxu0 0.0
  %1221 = vmatpush1.msra.mxu0 0.0
  %1222 = vmatprep.subr.mxu0 0.0
  %1223 = vmatpush1.msra.mxu0 0.0
  %1224 = vmatprep.subr.mxu0 0.0
  %1225 = vmatpush1.msra.mxu0 0.0
  %1226 = vmatprep.subr.mxu0 0.0
  %1227 = vmatpush1.msra.mxu0 0.0
  %1228 = vmatprep.subr.mxu0 0.0
  %1229 = vmatpush1.msra.mxu0 0.0
  %1230 = vmatprep.subr.mxu0 0.0
  %1231 = vmatpush1.msra.mxu0 0.0
  %1232 = vmatprep.subr.mxu0 0.0
  %1233 = vmatpush1.msra.mxu0 0.0
  %1234 = vmatprep.subr.mxu0 0.0
  %1235 = vmatpush1.msra.mxu0 0.0
  %1236 = vmatprep.subr.mxu0 0.0
  %1237 = vmatpush1.msra.mxu0 0.0
  %1238 = vmatprep.subr.mxu0 0.0
  %1239 = vmatpush1.msra.mxu0 0.0
  %1240 = vmatprep.subr.mxu0 0.0
  %1241 = vmatpush1.msra.mxu0 0.0
  %1242 = vmatprep.subr.mxu0 0.0
  %1243 = vmatpush1.msra.mxu0 0.0
  %1244 = vmatprep.subr.mxu0 0.0
  %1245 = vmatpush1.msra.mxu0 0.0
  %1246 = vmatprep.subr.mxu0 0.0
  %1247 = vmatpush1.msra.mxu0 0.0
  %1248 = vmatprep.subr.mxu0 0.0
  %1249 = vmatpush1.msra.mxu0 0.0
  %1250 = vmatprep.subr.mxu0 %v1076
  %1251 = vmatpush1.msra.mxu0 %v1074
  %1252 = vmatprep.subr.mxu0 0.0
  %1253 = vmatpush2.msra.mxu0 0.0
  %1254 = vmatprep.subr.mxu0 0.0
  %1255 = vmatpush2.msra.mxu0 0.0
  %1256 = vmatprep.subr.mxu0 0.0
  %1257 = vmatpush2.msra.mxu0 0.0
  %1258 = vmatprep.subr.mxu0 0.0
  %1259 = vmatpush2.msra.mxu0 0.0
  %1260 = vmatprep.subr.mxu0 0.0
  %1261 = vmatpush2.msra.mxu0 0.0
  %1262 = vmatprep.subr.mxu0 0.0
  %1263 = vmatpush2.msra.mxu0 0.0
  %1264 = vmatprep.subr.mxu0 0.0
  %1265 = vmatpush2.msra.mxu0 0.0
  %1266 = vmatprep.subr.mxu0 0.0
  %1267 = vmatpush2.msra.mxu0 0.0
  %1268 = vmatprep.subr.mxu0 0.0
  %1269 = vmatpush2.msra.mxu0 0.0
  %1270 = vmatprep.subr.mxu0 0.0
  %1271 = vmatpush2.msra.mxu0 0.0
  %1272 = vmatprep.subr.mxu0 0.0
  %1273 = vmatpush2.msra.mxu0 0.0
  %1274 = vmatprep.subr.mxu0 0.0
  %1275 = vmatpush2.msra.mxu0 0.0
  %1276 = vmatprep.subr.mxu0 0.0
  %1277 = vmatpush2.msra.mxu0 0.0
  %1278 = vmatprep.subr.mxu0 0.0
  %1279 = vmatpush2.msra.mxu0 0.0
  %1280 = vmatprep.subr.mxu0 0.0
  %1281 = vmatpush2.msra.mxu0 0.0
  %1282 = vmatprep.subr.mxu0 0.0
  %1283 = vmatpush2.msra.mxu0 0.0
  %1284 = vmatprep.mubr.f32.mxu0 0.0
  %1285 = vmatmul.mubr.f32.gmra.mxu0 %v1064
  %v1286 = vpop.f32.mrf.mxu0
  %v1287 = vadd.f32 0.0, %v1286
  %v1288 = vpop.f32.mrf.mxu0
  %v1289 = vadd.f32 0.0, %v1288
  %1290 = vdwg.mxu0
  %v1291 = vld [vmem:[%s9] sm:$0xff]
  %v1292 = vld [vmem:[%s10] sm:$0xff]
  %v1293 = vmul.f32 %v1145, %v544
  %v1294 = vmul.f32 %v1147, %v548
  %v1295 = vmul.f32 %v1216, %v552
  %v1296 = vmul.f32 %v1218, %v556
  %v1297 = vmul.f32 %v1287, %v560
  %v1298 = vmul.f32 %v1289, %v564
  %v1299 = vadd.f32 %v1293, %v1294
  %v1300 = vadd.f32 %v1299, %v1295
  %v1301 = vadd.f32 %v1300, %v1296
  %v1302 = vadd.f32 %v1301, %v1297
  %v1303 = vadd.f32 %v1302, %v1298
  %1304 = vadd.xlane.f32.xlu0 %v1303
  %v1305 = vpop.xlane.xlu0 %1304
  %v1306 = vmul.f32 %v1293, %v1293
  %v1307 = vmul.f32 %v1294, %v1294
  %v1308 = vmul.f32 %v1295, %v1295
  %v1309 = vmul.f32 %v1296, %v1296
  %v1310 = vmul.f32 %v1297, %v1297
  %v1311 = vmul.f32 %v1298, %v1298
  %v1312 = vadd.f32 %v1306, %v1307
  %v1313 = vadd.f32 %v1312, %v1308
  %v1314 = vadd.f32 %v1313, %v1309
  %v1315 = vadd.f32 %v1314, %v1310
  %v1316 = vadd.f32 %v1315, %v1311
  %1317 = vadd.xlane.f32.xlu0 %v1316
  %v1318 = vpop.xlane.xlu0 %1317
  %v1319 = vmul.f32 %v1305, 0.001953125
  %v1320 = vmul.f32 %v1318, 0.001953125
  %v1321 = vmul.f32 %v1319, %v1319
  %v1322 = vsub.f32 %v1320, %v1321
  %v1323 = vadd.f32 %v1322, 1e-05
  %v1324 = vrsqrt.pop %v1323
  %v1325 = vmul.f32 %v1291, %v1324
  %v1326 = vmul.f32 %v1319, %v1325
  %v1327 = vsub.f32 %v1292, %v1326
  %1329 = vset.pattern.permute.xlu0 0
  %1330 = vperm.xlu0 %1329, %v1325
  %v1331 = vpop.permute.xlu0 %1330
  %v1333 = vmul.f32 %v1145, %v1331
  %v1334 = vmul.f32 %v1147, %v1331
  %v1335 = vmul.f32 %v1216, %v1331
  %v1336 = vmul.f32 %v1218, %v1331
  %v1337 = vmul.f32 %v1287, %v1331
  %v1338 = vmul.f32 %v1289, %v1331
  %1340 = vset.pattern.permute.xlu0 0
  %1341 = vperm.xlu0 %1340, %v1327
  %v1342 = vpop.permute.xlu0 %1341
  %v1344 = vadd.f32 %v1333, %v1342
  %v1345 = vadd.f32 %v1334, %v1342
  %v1346 = vadd.f32 %v1335, %v1342
  %v1347 = vadd.f32 %v1336, %v1342
  %v1348 = vadd.f32 %v1337, %v1342
  %v1349 = vadd.f32 %v1338, %v1342
  %v1350 = vadd.f32 %v1344, %v1055
  %v1351 = vadd.f32 %v1345, %v1056
  %v1352 = vadd.f32 %v1346, %v1057
  %v1353 = vadd.f32 %v1347, %v1058
  %v1354 = vadd.f32 %v1348, %v1059
  %v1355 = vadd.f32 %v1349, %v1060
  %1356 = vst [vmem:[%s11] sm:$0xff] %v1350
  %1357 = vst [vmem:[%s11 + $0x8] sm:$0xff] %v1351
  %1358 = vst [vmem:[%s11 + $0x10] sm:$0xff] %v1352
  %1359 = vst [vmem:[%s11 + $0x18] sm:$0xff] %v1353
  %1360 = vst [vmem:[%s11 + $0x20] sm:$0xff] %v1354
  %1361 = vst [vmem:[%s11 + $0x28] sm:$0xff] %v1355
  // Predicated region
  $region46: #{resblock_forward.1} parent=0 // pred_check
    _
  $region47: #{resblock_forward.1} parent=0 // pred_check_branch
    %1363 = sbr.rel (0) target = $region49
  $region48: #{resblock_forward.1} parent=0 // pred_region
    _
  $region49: #{resblock_forward.1} parent=0 // pred_fallthru
    _
  // Predicated region
  $region50: #{resblock_forward.1} parent=0 // pred_check
    _
  $region51: #{resblock_forward.1} parent=0 // pred_check_branch
    %1365 = sbr.rel (0) target = $region53
  $region52: #{resblock_forward.1} parent=0 // pred_region
    _
  $region53: #{resblock_forward.1} parent=0 // pred_fallthru
    _

</llo_original>
